<compile_context>
chip_gen: v6e
topology: v6e:2x2x1
jax: 0.10.0
libtpu: 0.0.40
codegen_flags: <defaults>
</compile_context>

<pallas_src>
import functools

import jax
import jax.numpy as jnp
from jax import lax
from jax.experimental import pallas as pl
from jax.experimental.pallas import tpu as pltpu

KSIZE = 3           # spatial conv kernel size (padding = 1)
K_EXPERTS = 4       # K in Dynamic_conv2d
TEMPERATURE = 34.0  # DyC_attention2d temperature


def _round_up(x, m):
    return ((x + m - 1) // m) * m


def _pick_lane_tile(hw):
    """Lane sub-tile for the reduce/conv/apply loops (bounds vreg pressure)."""
    for cand in (1024, 512, 256, 128):
        if hw % cand == 0:
            return cand
    return hw                                   # small / odd spatial sizes


def _pick_chunk(c, lane_tile):
    """Sublane chunk for the C loops; keep chunk*lane_tile around <=16 vregs."""
    cap = max(8, (16 * 1024) // max(lane_tile, 128))
    if c <= cap:
        return c
    return max(8, (cap // 8) * 8)


def _vmem_capacity_bytes():
    try:
        info = pltpu.get_tpu_info()
        for name in ("vmem_capacity_bytes", "vmem_bytes", "vmem_size_bytes"):
            v = getattr(info, name, None)
            if v:
                return int(v)
    except Exception:
        pass
    return 64 << 20                             # conservative: v7x per-core VMEM


def _seq_loop(lo, hi, body, carry, static_limit=8):
    """Fully-unrolled static loop for short trip counts, fori_loop otherwise."""
    n = hi - lo
    if n <= 0:
        return carry
    if n <= static_limit:
        for i in range(lo, hi):
            carry = body(i, carry)
        return carry
    return lax.fori_loop(lo, hi, body, carry)


def spatial_attn_kernel(x_ref, colmask_ref, fc1_ref, fc2w_ref, fc2b_ref,
                        wflat_ref, bflat_ref, out_ref, pad_ref, scale_ref,
                        *, H, W, chunk, lane_tile, pad_left):
    # x_ref      : (b_tile, C, H*W)  VMEM, input dtype, lane-dense
    # colmask_ref: (2, H*W)  f32     VMEM, [col>=1, col<=W-2] validity masks
    # fc1_ref    : (1, 2)            SMEM, Conv2d(2,1,1,bias=False) weight
    # fc2w_ref   : (1, K)            SMEM, Conv2d(1,K,1) weight
    # fc2b_ref   : (1, K)            SMEM, Conv2d(1,K,1) bias
    # wflat_ref  : (K, 2*3*3)        SMEM, dynamic conv weight bank
    # bflat_ref  : (1, K)            SMEM, dynamic conv bias bank
    # out_ref    : (b_tile, C, H*W)  VMEM, input dtype
    # pad_ref    : (2, L)    f32     VMEM scratch, 128-aligned row-padded maps
    # scale_ref  : (1, H*W)  f32     VMEM scratch, sigmoid gate
    b_tile, C, HW = x_ref.shape
    L = pad_ref.shape[1]
    n_lt = HW // lane_tile
    n_full = C // chunk
    rem = C - n_full * chunk
    inv_C = 1.0 / C
    inv_HW = 1.0 / HW
    f32 = jnp.float32
    lane_aligned = (lane_tile % 128 == 0)

    def lane_off(lt, base=0):
        s = lt * lane_tile + base
        if isinstance(s, int):
            return s
        if lane_aligned and base % 128 == 0:
            return pl.multiple_of(s, 128)
        return s

    def chunk_off(i):
        return i * chunk if isinstance(i, int) else pl.multiple_of(i * chunk, chunk)

    # ---- zero the row-padding borders (interior rewritten per batch elem) ----
    pad_ref[:, 0:pad_left] = jnp.zeros((2, pad_left), f32)
    pad_ref[:, pad_left + HW:L] = jnp.zeros((2, L - pad_left - HW), f32)

    for b in range(b_tile):                      # static: b_tile is small
        # ---- ChannelPool: lane-tiled, C-chunked max / mean into pad_ref ----
        def reduce_tile(lt, carry):
            s_max, s_mean = carry
            s0 = lane_off(lt)
            blk0 = x_ref[b, pl.ds(0, chunk), pl.ds(s0, lane_tile)].astype(f32)
            init = (jnp.max(blk0, axis=0, keepdims=True),
                    jnp.sum(blk0, axis=0, keepdims=True))

            def red_chunk(i, rc):
                rmax, rsum = rc
                c0 = chunk_off(i)
                blk = x_ref[b, pl.ds(c0, chunk), pl.ds(s0, lane_tile)].astype(f32)
                return (jnp.maximum(rmax, jnp.max(blk, axis=0, keepdims=True)),
                        rsum + jnp.sum(blk, axis=0, keepdims=True))

            rmax, rsum = _seq_loop(1, n_full, red_chunk, init)
            if rem:
                blk = x_ref[b, pl.ds(n_full * chunk, rem),
                            pl.ds(s0, lane_tile)].astype(f32)
                rmax = jnp.maximum(rmax, jnp.max(blk, axis=0, keepdims=True))
                rsum = rsum + jnp.sum(blk, axis=0, keepdims=True)
            rmean = rsum * inv_C
            pad_ref[0:1, pl.ds(lane_off(lt, pad_left), lane_tile)] = rmax
            pad_ref[1:2, pl.ds(lane_off(lt, pad_left), lane_tile)] = rmean
            return (s_max + jnp.sum(rmax, axis=1, keepdims=True),
                    s_mean + jnp.sum(rmean, axis=1, keepdims=True))

        zero11 = jnp.zeros((1, 1), f32)
        s_max, s_mean = _seq_loop(0, n_lt, reduce_tile, (zero11, zero11))

        # ---- DyC_attention2d: avgpool -> fc1 -> relu -> fc2 -> softmax(./T) ----
        p_max = s_max * inv_HW                               # (1, 1)
        p_mean = s_mean * inv_HW                             # (1, 1)
        h = jnp.maximum(fc1_ref[0, 0] * p_max + fc1_ref[0, 1] * p_mean, 0.0)
        z = [(h * fc2w_ref[0, k] + fc2b_ref[0, k]) * (1.0 / TEMPERATURE)
             for k in range(K_EXPERTS)]
        zmax = z[0]
        for k in range(1, K_EXPERTS):
            zmax = jnp.maximum(zmax, z[k])
        e = [jnp.exp(zk - zmax) for zk in z]
        den = e[0]
        for k in range(1, K_EXPERTS):
            den = den + e[k]
        inv_den = pl.reciprocal(den, approx=False)
        attn = [ek * inv_den for ek in e]                    # K x (1, 1)

        agg_b = attn[0] * bflat_ref[0, 0]
        for k in range(1, K_EXPERTS):
            agg_b = agg_b + attn[k] * bflat_ref[0, k]        # (1, 1)

        # Aggregated 2x3x3 tap weights (loop-invariant over lane tiles).
        w_taps = []
        for tap in range(2 * KSIZE * KSIZE):
            wt = attn[0] * wflat_ref[0, tap]
            for k in range(1, K_EXPERTS):
                wt = wt + attn[k] * wflat_ref[k, tap]
            w_taps.append(wt)                                # (1, 1)

        # ---- 3x3 "same" conv on the flat compressed maps + sigmoid gate ----
        # Row (top/bottom) padding handled by the zeroed borders; column
        # wraparound killed by the precomputed left/right masks.
        def conv_tile(lt, carry):
            s0 = lane_off(lt)
            m_left = colmask_ref[0:1, pl.ds(s0, lane_tile)]
            m_right = colmask_ref[1:2, pl.ds(s0, lane_tile)]
            acc = jnp.broadcast_to(agg_b, (1, lane_tile))
            for c in range(2):
                for dy in (-1, 0, 1):
                    for dx in (-1, 0, 1):
                        tap = c * (KSIZE * KSIZE) + (dy + 1) * KSIZE + (dx + 1)
                        if dy == 0 and dx == 0:
                            start = lane_off(lt, pad_left)       # aligned tap
                        else:
                            start = lt * lane_tile + pad_left + dy * W + dx
                        shifted = pad_ref[c:c + 1, pl.ds(start, lane_tile)]
                        if dx == -1:
                            shifted = shifted * m_left
                        elif dx == 1:
                            shifted = shifted * m_right
                        acc = acc + w_taps[tap] * shifted
            # sigmoid: EUP exp + reciprocal (approx=False keeps 1e-4 accuracy)
            scale_ref[0:1, pl.ds(s0, lane_tile)] = pl.reciprocal(
                1.0 + jnp.exp(-acc), approx=False)
            return carry

        _seq_loop(0, n_lt, conv_tile, 0)

        # ---- apply gate: lane-tiled, C-chunked, broadcast hoisted ----
        def apply_tile(lt, carry):
            s0 = lane_off(lt)
            sc = scale_ref[0:1, pl.ds(s0, lane_tile)]            # (1, LT)
            sc_b = jnp.broadcast_to(sc, (chunk, lane_tile))      # hoisted once

            def apply_chunk(i, cc):
                c0 = chunk_off(i)
                blk = x_ref[b, pl.ds(c0, chunk), pl.ds(s0, lane_tile)].astype(f32)
                out_ref[b, pl.ds(c0, chunk), pl.ds(s0, lane_tile)] = (
                    blk * sc_b).astype(out_ref.dtype)
                return cc

            _seq_loop(0, n_full, apply_chunk, 0)
            if rem:
                c0 = n_full * chunk
                blk = x_ref[b, pl.ds(c0, rem), pl.ds(s0, lane_tile)].astype(f32)
                out_ref[b, pl.ds(c0, rem), pl.ds(s0, lane_tile)] = (
                    blk * jnp.broadcast_to(sc, (rem, lane_tile))
                ).astype(out_ref.dtype)
            return carry

        _seq_loop(0, n_lt, apply_tile, 0)


@jax.jit
def spatial_attn_layer(x, params):
    fc1_w, fc2_w, fc2_b, dyn_w, dyn_b = params
    B, C, H, W = x.shape
    HW = H * W

    lane_tile = _pick_lane_tile(HW)
    chunk = _pick_chunk(C, lane_tile)
    pad_left = _round_up(W + 1, 128)
    pad_len = pad_left + HW + _round_up(W + 1, 128)

    # Keep HBM I/O in the input dtype; spatial dims flattened onto the lane axis.
    x_flat = x.reshape(B, C, HW)

    # Small parameters, SMEM resident.
    fc1 = fc1_w.reshape(1, 2).astype(jnp.float32)                    # (1, 2)
    fc2w = fc2_w.reshape(1, K_EXPERTS).astype(jnp.float32)           # (1, K)
    fc2b = fc2_b.reshape(1, K_EXPERTS).astype(jnp.float32)           # (1, K)
    wflat = dyn_w.reshape(K_EXPERTS, 2 * KSIZE * KSIZE).astype(jnp.float32)
    bflat = dyn_b.reshape(1, K_EXPERTS).astype(jnp.float32)          # (1, K)

    # Column validity masks for the flat conv (computed once, tiny).
    col = jnp.arange(HW, dtype=jnp.int32) % W
    colmask = jnp.stack([(col >= 1).astype(jnp.float32),
                         (col <= W - 2).astype(jnp.float32)], axis=0)  # (2, HW)

    # Batch packing: amortize per-grid-step overhead for tiny maps while keeping
    # >= 2 grid steps so both v7x TensorCores get work.
    itemsize = jnp.dtype(x.dtype).itemsize
    elem_bytes = C * HW * itemsize
    b_tile = 1
    if elem_bytes < (1 << 20) and B > 1:
        want = max(1, min(B // 2, (1 << 20) // max(elem_bytes, 1)))
        for d in range(want, 0, -1):
            if B % d == 0:
                b_tile = d
                break
    grid = (B // b_tile,)

    # Generation-aware VMEM request (v7x: 64 MiB/TC; v6e/v5e: 128 MiB).
    block_bytes = b_tile * C * HW * itemsize
    need = (4 * block_bytes                 # double-buffered in + out blocks
            + 2 * 2 * HW * 4                # colmask (double-buffered)
            + 2 * pad_len * 4 + HW * 4      # pad + scale scratch
            + (4 << 20))                    # headroom for internal scratch
    cap = _vmem_capacity_bytes()
    vmem_limit = int(min(max(need, 32 << 20), max(cap - (8 << 20), 16 << 20)))

    kernel = functools.partial(spatial_attn_kernel, H=H, W=W, chunk=chunk,
                               lane_tile=lane_tile, pad_left=pad_left)

    out_flat = pl.pallas_call(
        kernel,
        out_shape=jax.ShapeDtypeStruct((B, C, HW), x.dtype),
        grid_spec=pltpu.PrefetchScalarGridSpec(
            num_scalar_prefetch=0,
            grid=grid,
            in_specs=[
                pl.BlockSpec((b_tile, C, HW), lambda b: (b, 0, 0)),   # x
                pl.BlockSpec((2, HW), lambda b: (0, 0)),              # col masks
                pl.BlockSpec(memory_space=pltpu.MemorySpace.SMEM),    # fc1
                pl.BlockSpec(memory_space=pltpu.MemorySpace.SMEM),    # fc2 weight
                pl.BlockSpec(memory_space=pltpu.MemorySpace.SMEM),    # fc2 bias
                pl.BlockSpec(memory_space=pltpu.MemorySpace.SMEM),    # dyn weights
                pl.BlockSpec(memory_space=pltpu.MemorySpace.SMEM),    # dyn bias
            ],
            out_specs=pl.BlockSpec((b_tile, C, HW), lambda b: (b, 0, 0)),
            scratch_shapes=[pltpu.VMEM((2, pad_len), jnp.float32),
                            pltpu.VMEM((1, HW), jnp.float32)],
        ),
        compiler_params=pltpu.CompilerParams(
            dimension_semantics=("parallel",),
            vmem_limit_bytes=vmem_limit),
    )(x_flat, colmask, fc1, fc2w, fc2b, wflat, bflat)

    return out_flat.reshape(B, C, H, W)


def reference(x, params):
    """Pure-JAX reference mirroring the PyTorch module exactly."""
    fc1_w, fc2_w, fc2_b, dyn_w, dyn_b = params
    B, C, H, W = x.shape
    x_max = jnp.max(x, axis=1)
    x_mean = jnp.mean(x, axis=1)
    compress = jnp.stack([x_max, x_mean], axis=1)                 # (B, 2, H, W)
    pool = jnp.mean(compress, axis=(2, 3))                        # (B, 2)
    h = jnp.maximum(pool @ fc1_w.reshape(1, 2).T, 0.0)            # (B, 1)
    logits = h @ fc2_w.reshape(K_EXPERTS, 1).T + fc2_b.reshape(1, K_EXPERTS)
    attn = jax.nn.softmax(logits / TEMPERATURE, axis=1)           # (B, K)
    agg_w = (attn @ dyn_w.reshape(K_EXPERTS, -1)).reshape(B, 2, KSIZE, KSIZE)
    agg_b = attn @ dyn_b.reshape(K_EXPERTS, 1)                    # (B, 1)
    conv = jax.lax.conv_general_dilated(
        compress.reshape(1, B * 2, H, W), agg_w,
        window_strides=(1, 1), padding=((1, 1), (1, 1)),
        feature_group_count=B,
        dimension_numbers=("NCHW", "OIHW", "NCHW"))
    conv = conv.reshape(B, 1, H, W) + agg_b.reshape(B, 1, 1, 1)
    scale = jax.nn.sigmoid(conv)
    return x * scale


if __name__ == "__main__":
    key = jax.random.PRNGKey(0)
    k1, k2, k3, k4, k5, kx = jax.random.split(key, 6)

    # Deterministic synthetic parameters (shapes per module __init__):
    fc1_w = jax.random.normal(k1, (1, 2, 1, 1), jnp.float32)          # fc1: Conv2d(2,1,1,bias=False)
    fc2_w = jax.random.normal(k2, (K_EXPERTS, 1, 1, 1), jnp.float32)  # fc2: Conv2d(1,K,1)
    fc2_b = 0.1 * jax.random.normal(k3, (K_EXPERTS,), jnp.float32)
    dyn_w = 0.5 * jax.random.normal(k4, (K_EXPERTS, 1, 2, KSIZE, KSIZE), jnp.float32)
    dyn_b = 0.1 * jax.random.normal(k5, (K_EXPERTS, 1), jnp.float32)
    params = (fc1_w, fc2_w, fc2_b, dyn_w, dyn_b)

    x = jax.random.normal(kx, (2, 4, 16, 16), jnp.float32)            # (B, C, H, W)

    out = spatial_attn_layer(x, params)
    jax.block_until_ready(out)

    with jax.default_matmul_precision("float32"):
        ref = reference(x, params)
    assert out.shape == x.shape and out.dtype == x.dtype
    assert jnp.allclose(out, ref, rtol=1e-4, atol=1e-4), (
        float(jnp.max(jnp.abs(out - ref))))
    print("KERNEL_OK")
</pallas_src>

<mosaic_0001>
module attributes {stable_mosaic.version = 11 : i64} {
  func.func @spatial_attn_kernel(%arg0: i32, %arg1: memref<1x4x256xf32, #tpu.memory_space<vmem>>, %arg2: memref<2x256xf32, #tpu.memory_space<vmem>>, %arg3: memref<1x2xf32, #tpu.memory_space<smem>>, %arg4: memref<1x4xf32, #tpu.memory_space<smem>>, %arg5: memref<1x4xf32, #tpu.memory_space<smem>>, %arg6: memref<4x18xf32, #tpu.memory_space<smem>>, %arg7: memref<1x4xf32, #tpu.memory_space<smem>>, %arg8: memref<1x4x256xf32, #tpu.memory_space<vmem>>, %arg9: memref<2x512xf32, #tpu.memory_space<vmem>>, %arg10: memref<1x256xf32, #tpu.memory_space<vmem>>) attributes {dimension_semantics = [#tpu.dimension_semantics<parallel>], iteration_bounds = array<i64: 2>, scalar_prefetch = 0 : i64, scratch_operands = 2 : i64, tpu.core_type = #tpu.core_type<tc>, window_params = [{transform_indices = @transform_0, window_bounds = array<i64: 1, 4, 256>}, {pipeline_mode = #tpu.pipeline_mode<synchronous>, transform_indices = @transform_1, window_bounds = array<i64: 2, 256>}, {transform_indices = @transform_2, window_bounds = array<i64: 1, 2>}, {transform_indices = @transform_3, window_bounds = array<i64: 1, 4>}, {transform_indices = @transform_4, window_bounds = array<i64: 1, 4>}, {transform_indices = @transform_5, window_bounds = array<i64: 4, 18>}, {transform_indices = @transform_6, window_bounds = array<i64: 1, 4>}, {transform_indices = @transform_7, window_bounds = array<i64: 1, 4, 256>}]} {
    %cst = arith.constant 0.000000e+00 : f32
    %0 = vector.broadcast %cst : f32 to vector<2x128xf32>
    %c0 = arith.constant 0 : index
    %c0_0 = arith.constant 0 : index
    %1 = vector.load %arg9[%c0, %c0_0] : memref<2x512xf32, #tpu.memory_space<vmem>>, vector<2x128xf32>
    tpu.vector_store %arg9[%c0, %c0_0], %0 {strides = array<i32>} : memref<2x512xf32, #tpu.memory_space<vmem>>, vector<2x128xf32>,
    %cst_1 = arith.constant 0.000000e+00 : f32
    %2 = vector.broadcast %cst_1 : f32 to vector<2x128xf32>
    %c0_2 = arith.constant 0 : index
    %c384 = arith.constant 384 : index
    %3 = vector.load %arg9[%c0_2, %c384] : memref<2x512xf32, #tpu.memory_space<vmem>>, vector<2x128xf32>
    tpu.vector_store %arg9[%c0_2, %c384], %2 {strides = array<i32>} : memref<2x512xf32, #tpu.memory_space<vmem>>, vector<2x128xf32>,
    %cst_3 = arith.constant 0.000000e+00 : f32
    %4 = vector.broadcast %cst_3 : f32 to vector<1x1xf32>
    %c0_4 = arith.constant 0 : index
    %c0_5 = arith.constant 0 : index
    %c0_6 = arith.constant 0 : index
    %5 = vector.load %arg1[%c0_4, %c0_5, %c0_6] : memref<1x4x256xf32, #tpu.memory_space<vmem>>, vector<1x4x256xf32>
    %6 = vector.shape_cast %5 : vector<1x4x256xf32> to vector<4x256xf32>
    %cst_7 = arith.constant dense<0xFF800000> : vector<256xf32>
    %7 = vector.multi_reduction <maximumf>, %6, %cst_7 [0] : vector<4x256xf32> to vector<256xf32>
    %8 = vector.shape_cast %7 : vector<256xf32> to vector<1x256xf32>
    %cst_8 = arith.constant dense<0.000000e+00> : vector<256xf32>
    %9 = vector.multi_reduction <add>, %6, %cst_8 [0] : vector<4x256xf32> to vector<256xf32>
    %10 = vector.shape_cast %9 : vector<256xf32> to vector<1x256xf32>
    %cst_9 = arith.constant 2.500000e-01 : f32
    %11 = vector.broadcast %cst_9 : f32 to vector<1x256xf32>
    %12 = arith.mulf %10, %11 : vector<1x256xf32>
    %c0_10 = arith.constant 0 : index
    %c128 = arith.constant 128 : index
    %13 = vector.load %arg9[%c0_10, %c128] : memref<2x512xf32, #tpu.memory_space<vmem>>, vector<1x256xf32>
    tpu.vector_store %arg9[%c0_10, %c128], %8 {strides = array<i32>} : memref<2x512xf32, #tpu.memory_space<vmem>>, vector<1x256xf32>,
    %c1 = arith.constant 1 : index
    %c128_11 = arith.constant 128 : index
    %14 = vector.load %arg9[%c1, %c128_11] : memref<2x512xf32, #tpu.memory_space<vmem>>, vector<1x256xf32>
    tpu.vector_store %arg9[%c1, %c128_11], %12 {strides = array<i32>} : memref<2x512xf32, #tpu.memory_space<vmem>>, vector<1x256xf32>,
    %cst_12 = arith.constant dense<0.000000e+00> : vector<1xf32>
    %15 = vector.multi_reduction <add>, %8, %cst_12 [1] : vector<1x256xf32> to vector<1xf32>
    %16 = vector.shape_cast %15 : vector<1xf32> to vector<1x1xf32>
    %17 = arith.addf %4, %16 : vector<1x1xf32>
    %cst_13 = arith.constant dense<0.000000e+00> : vector<1xf32>
    %18 = vector.multi_reduction <add>, %12, %cst_13 [1] : vector<1x256xf32> to vector<1xf32>
    %19 = vector.shape_cast %18 : vector<1xf32> to vector<1x1xf32>
    %20 = arith.addf %4, %19 : vector<1x1xf32>
    %cst_14 = arith.constant 3.906250e-03 : f32
    %21 = vector.broadcast %cst_14 : f32 to vector<1x1xf32>
    %22 = arith.mulf %17, %21 : vector<1x1xf32>
    %cst_15 = arith.constant 3.906250e-03 : f32
    %23 = vector.broadcast %cst_15 : f32 to vector<1x1xf32>
    %24 = arith.mulf %20, %23 : vector<1x1xf32>
    %c0_16 = arith.constant 0 : index
    %c0_17 = arith.constant 0 : index
    %25 = memref.load %arg3[%c0_16, %c0_17] : memref<1x2xf32, #tpu.memory_space<smem>>
    %26 = vector.broadcast %25 : f32 to vector<1x1xf32>
    %27 = arith.mulf %26, %22 : vector<1x1xf32>
    %c0_18 = arith.constant 0 : index
    %c1_19 = arith.constant 1 : index
    %28 = memref.load %arg3[%c0_18, %c1_19] : memref<1x2xf32, #tpu.memory_space<smem>>
    %29 = vector.broadcast %28 : f32 to vector<1x1xf32>
    %30 = arith.mulf %29, %24 : vector<1x1xf32>
    %31 = arith.addf %27, %30 : vector<1x1xf32>
    %cst_20 = arith.constant 0.000000e+00 : f32
    %32 = vector.broadcast %cst_20 : f32 to vector<1x1xf32>
    %33 = arith.maximumf %31, %32 : vector<1x1xf32>
    %c0_21 = arith.constant 0 : index
    %c0_22 = arith.constant 0 : index
    %34 = memref.load %arg4[%c0_21, %c0_22] : memref<1x4xf32, #tpu.memory_space<smem>>
    %35 = vector.broadcast %34 : f32 to vector<1x1xf32>
    %36 = arith.mulf %33, %35 : vector<1x1xf32>
    %c0_23 = arith.constant 0 : index
    %c0_24 = arith.constant 0 : index
    %37 = memref.load %arg5[%c0_23, %c0_24] : memref<1x4xf32, #tpu.memory_space<smem>>
    %38 = vector.broadcast %37 : f32 to vector<1x1xf32>
    %39 = arith.addf %36, %38 : vector<1x1xf32>
    %cst_25 = arith.constant 0.0294117648 : f32
    %40 = vector.broadcast %cst_25 : f32 to vector<1x1xf32>
    %41 = arith.mulf %39, %40 : vector<1x1xf32>
    %c0_26 = arith.constant 0 : index
    %c1_27 = arith.constant 1 : index
    %42 = memref.load %arg4[%c0_26, %c1_27] : memref<1x4xf32, #tpu.memory_space<smem>>
    %43 = vector.broadcast %42 : f32 to vector<1x1xf32>
    %44 = arith.mulf %33, %43 : vector<1x1xf32>
    %c0_28 = arith.constant 0 : index
    %c1_29 = arith.constant 1 : index
    %45 = memref.load %arg5[%c0_28, %c1_29] : memref<1x4xf32, #tpu.memory_space<smem>>
    %46 = vector.broadcast %45 : f32 to vector<1x1xf32>
    %47 = arith.addf %44, %46 : vector<1x1xf32>
    %cst_30 = arith.constant 0.0294117648 : f32
    %48 = vector.broadcast %cst_30 : f32 to vector<1x1xf32>
    %49 = arith.mulf %47, %48 : vector<1x1xf32>
    %c0_31 = arith.constant 0 : index
    %c2 = arith.constant 2 : index
    %50 = memref.load %arg4[%c0_31, %c2] : memref<1x4xf32, #tpu.memory_space<smem>>
    %51 = vector.broadcast %50 : f32 to vector<1x1xf32>
    %52 = arith.mulf %33, %51 : vector<1x1xf32>
    %c0_32 = arith.constant 0 : index
    %c2_33 = arith.constant 2 : index
    %53 = memref.load %arg5[%c0_32, %c2_33] : memref<1x4xf32, #tpu.memory_space<smem>>
    %54 = vector.broadcast %53 : f32 to vector<1x1xf32>
    %55 = arith.addf %52, %54 : vector<1x1xf32>
    %cst_34 = arith.constant 0.0294117648 : f32
    %56 = vector.broadcast %cst_34 : f32 to vector<1x1xf32>
    %57 = arith.mulf %55, %56 : vector<1x1xf32>
    %c0_35 = arith.constant 0 : index
    %c3 = arith.constant 3 : index
    %58 = memref.load %arg4[%c0_35, %c3] : memref<1x4xf32, #tpu.memory_space<smem>>
    %59 = vector.broadcast %58 : f32 to vector<1x1xf32>
    %60 = arith.mulf %33, %59 : vector<1x1xf32>
    %c0_36 = arith.constant 0 : index
    %c3_37 = arith.constant 3 : index
    %61 = memref.load %arg5[%c0_36, %c3_37] : memref<1x4xf32, #tpu.memory_space<smem>>
    %62 = vector.broadcast %61 : f32 to vector<1x1xf32>
    %63 = arith.addf %60, %62 : vector<1x1xf32>
    %cst_38 = arith.constant 0.0294117648 : f32
    %64 = vector.broadcast %cst_38 : f32 to vector<1x1xf32>
    %65 = arith.mulf %63, %64 : vector<1x1xf32>
    %66 = arith.maximumf %41, %49 : vector<1x1xf32>
    %67 = arith.maximumf %66, %57 : vector<1x1xf32>
    %68 = arith.maximumf %67, %65 : vector<1x1xf32>
    %69 = arith.subf %41, %68 : vector<1x1xf32>
    %70 = math.exp %69 : vector<1x1xf32>
    %71 = arith.subf %49, %68 : vector<1x1xf32>
    %72 = math.exp %71 : vector<1x1xf32>
    %73 = arith.subf %57, %68 : vector<1x1xf32>
    %74 = math.exp %73 : vector<1x1xf32>
    %75 = arith.subf %65, %68 : vector<1x1xf32>
    %76 = math.exp %75 : vector<1x1xf32>
    %77 = arith.addf %70, %72 : vector<1x1xf32>
    %78 = arith.addf %77, %74 : vector<1x1xf32>
    %79 = arith.addf %78, %76 : vector<1x1xf32>
    %80 = tpu.reciprocal %79 : vector<1x1xf32> -> vector<1x1xf32>
    %81 = arith.mulf %70, %80 : vector<1x1xf32>
    %82 = arith.mulf %72, %80 : vector<1x1xf32>
    %83 = arith.mulf %74, %80 : vector<1x1xf32>
    %84 = arith.mulf %76, %80 : vector<1x1xf32>
    %c0_39 = arith.constant 0 : index
    %c0_40 = arith.constant 0 : index
    %85 = memref.load %arg7[%c0_39, %c0_40] : memref<1x4xf32, #tpu.memory_space<smem>>
    %86 = vector.broadcast %85 : f32 to vector<1x1xf32>
    %87 = arith.mulf %81, %86 : vector<1x1xf32>
    %c0_41 = arith.constant 0 : index
    %c1_42 = arith.constant 1 : index
    %88 = memref.load %arg7[%c0_41, %c1_42] : memref<1x4xf32, #tpu.memory_space<smem>>
    %89 = vector.broadcast %88 : f32 to vector<1x1xf32>
    %90 = arith.mulf %82, %89 : vector<1x1xf32>
    %91 = arith.addf %87, %90 : vector<1x1xf32>
    %c0_43 = arith.constant 0 : index
    %c2_44 = arith.constant 2 : index
    %92 = memref.load %arg7[%c0_43, %c2_44] : memref<1x4xf32, #tpu.memory_space<smem>>
    %93 = vector.broadcast %92 : f32 to vector<1x1xf32>
    %94 = arith.mulf %83, %93 : vector<1x1xf32>
    %95 = arith.addf %91, %94 : vector<1x1xf32>
    %c0_45 = arith.constant 0 : index
    %c3_46 = arith.constant 3 : index
    %96 = memref.load %arg7[%c0_45, %c3_46] : memref<1x4xf32, #tpu.memory_space<smem>>
    %97 = vector.broadcast %96 : f32 to vector<1x1xf32>
    %98 = arith.mulf %84, %97 : vector<1x1xf32>
    %99 = arith.addf %95, %98 : vector<1x1xf32>
    %c0_47 = arith.constant 0 : index
    %c0_48 = arith.constant 0 : index
    %100 = memref.load %arg6[%c0_47, %c0_48] : memref<4x18xf32, #tpu.memory_space<smem>>
    %101 = vector.broadcast %100 : f32 to vector<1x1xf32>
    %102 = arith.mulf %81, %101 : vector<1x1xf32>
    %c1_49 = arith.constant 1 : index
    %c0_50 = arith.constant 0 : index
    %103 = memref.load %arg6[%c1_49, %c0_50] : memref<4x18xf32, #tpu.memory_space<smem>>
    %104 = vector.broadcast %103 : f32 to vector<1x1xf32>
    %105 = arith.mulf %82, %104 : vector<1x1xf32>
    %106 = arith.addf %102, %105 : vector<1x1xf32>
    %c2_51 = arith.constant 2 : index
    %c0_52 = arith.constant 0 : index
    %107 = memref.load %arg6[%c2_51, %c0_52] : memref<4x18xf32, #tpu.memory_space<smem>>
    %108 = vector.broadcast %107 : f32 to vector<1x1xf32>
    %109 = arith.mulf %83, %108 : vector<1x1xf32>
    %110 = arith.addf %106, %109 : vector<1x1xf32>
    %c3_53 = arith.constant 3 : index
    %c0_54 = arith.constant 0 : index
    %111 = memref.load %arg6[%c3_53, %c0_54] : memref<4x18xf32, #tpu.memory_space<smem>>
    %112 = vector.broadcast %111 : f32 to vector<1x1xf32>
    %113 = arith.mulf %84, %112 : vector<1x1xf32>
    %114 = arith.addf %110, %113 : vector<1x1xf32>
    %c0_55 = arith.constant 0 : index
    %c1_56 = arith.constant 1 : index
    %115 = memref.load %arg6[%c0_55, %c1_56] : memref<4x18xf32, #tpu.memory_space<smem>>
    %116 = vector.broadcast %115 : f32 to vector<1x1xf32>
    %117 = arith.mulf %81, %116 : vector<1x1xf32>
    %c1_57 = arith.constant 1 : index
    %c1_58 = arith.constant 1 : index
    %118 = memref.load %arg6[%c1_57, %c1_58] : memref<4x18xf32, #tpu.memory_space<smem>>
    %119 = vector.broadcast %118 : f32 to vector<1x1xf32>
    %120 = arith.mulf %82, %119 : vector<1x1xf32>
    %121 = arith.addf %117, %120 : vector<1x1xf32>
    %c2_59 = arith.constant 2 : index
    %c1_60 = arith.constant 1 : index
    %122 = memref.load %arg6[%c2_59, %c1_60] : memref<4x18xf32, #tpu.memory_space<smem>>
    %123 = vector.broadcast %122 : f32 to vector<1x1xf32>
    %124 = arith.mulf %83, %123 : vector<1x1xf32>
    %125 = arith.addf %121, %124 : vector<1x1xf32>
    %c3_61 = arith.constant 3 : index
    %c1_62 = arith.constant 1 : index
    %126 = memref.load %arg6[%c3_61, %c1_62] : memref<4x18xf32, #tpu.memory_space<smem>>
    %127 = vector.broadcast %126 : f32 to vector<1x1xf32>
    %128 = arith.mulf %84, %127 : vector<1x1xf32>
    %129 = arith.addf %125, %128 : vector<1x1xf32>
    %c0_63 = arith.constant 0 : index
    %c2_64 = arith.constant 2 : index
    %130 = memref.load %arg6[%c0_63, %c2_64] : memref<4x18xf32, #tpu.memory_space<smem>>
    %131 = vector.broadcast %130 : f32 to vector<1x1xf32>
    %132 = arith.mulf %81, %131 : vector<1x1xf32>
    %c1_65 = arith.constant 1 : index
    %c2_66 = arith.constant 2 : index
    %133 = memref.load %arg6[%c1_65, %c2_66] : memref<4x18xf32, #tpu.memory_space<smem>>
    %134 = vector.broadcast %133 : f32 to vector<1x1xf32>
    %135 = arith.mulf %82, %134 : vector<1x1xf32>
    %136 = arith.addf %132, %135 : vector<1x1xf32>
    %c2_67 = arith.constant 2 : index
    %c2_68 = arith.constant 2 : index
    %137 = memref.load %arg6[%c2_67, %c2_68] : memref<4x18xf32, #tpu.memory_space<smem>>
    %138 = vector.broadcast %137 : f32 to vector<1x1xf32>
    %139 = arith.mulf %83, %138 : vector<1x1xf32>
    %140 = arith.addf %136, %139 : vector<1x1xf32>
    %c3_69 = arith.constant 3 : index
    %c2_70 = arith.constant 2 : index
    %141 = memref.load %arg6[%c3_69, %c2_70] : memref<4x18xf32, #tpu.memory_space<smem>>
    %142 = vector.broadcast %141 : f32 to vector<1x1xf32>
    %143 = arith.mulf %84, %142 : vector<1x1xf32>
    %144 = arith.addf %140, %143 : vector<1x1xf32>
    %c0_71 = arith.constant 0 : index
    %c3_72 = arith.constant 3 : index
    %145 = memref.load %arg6[%c0_71, %c3_72] : memref<4x18xf32, #tpu.memory_space<smem>>
    %146 = vector.broadcast %145 : f32 to vector<1x1xf32>
    %147 = arith.mulf %81, %146 : vector<1x1xf32>
    %c1_73 = arith.constant 1 : index
    %c3_74 = arith.constant 3 : index
    %148 = memref.load %arg6[%c1_73, %c3_74] : memref<4x18xf32, #tpu.memory_space<smem>>
    %149 = vector.broadcast %148 : f32 to vector<1x1xf32>
    %150 = arith.mulf %82, %149 : vector<1x1xf32>
    %151 = arith.addf %147, %150 : vector<1x1xf32>
    %c2_75 = arith.constant 2 : index
    %c3_76 = arith.constant 3 : index
    %152 = memref.load %arg6[%c2_75, %c3_76] : memref<4x18xf32, #tpu.memory_space<smem>>
    %153 = vector.broadcast %152 : f32 to vector<1x1xf32>
    %154 = arith.mulf %83, %153 : vector<1x1xf32>
    %155 = arith.addf %151, %154 : vector<1x1xf32>
    %c3_77 = arith.constant 3 : index
    %c3_78 = arith.constant 3 : index
    %156 = memref.load %arg6[%c3_77, %c3_78] : memref<4x18xf32, #tpu.memory_space<smem>>
    %157 = vector.broadcast %156 : f32 to vector<1x1xf32>
    %158 = arith.mulf %84, %157 : vector<1x1xf32>
    %159 = arith.addf %155, %158 : vector<1x1xf32>
    %c0_79 = arith.constant 0 : index
    %c4 = arith.constant 4 : index
    %160 = memref.load %arg6[%c0_79, %c4] : memref<4x18xf32, #tpu.memory_space<smem>>
    %161 = vector.broadcast %160 : f32 to vector<1x1xf32>
    %162 = arith.mulf %81, %161 : vector<1x1xf32>
    %c1_80 = arith.constant 1 : index
    %c4_81 = arith.constant 4 : index
    %163 = memref.load %arg6[%c1_80, %c4_81] : memref<4x18xf32, #tpu.memory_space<smem>>
    %164 = vector.broadcast %163 : f32 to vector<1x1xf32>
    %165 = arith.mulf %82, %164 : vector<1x1xf32>
    %166 = arith.addf %162, %165 : vector<1x1xf32>
    %c2_82 = arith.constant 2 : index
    %c4_83 = arith.constant 4 : index
    %167 = memref.load %arg6[%c2_82, %c4_83] : memref<4x18xf32, #tpu.memory_space<smem>>
    %168 = vector.broadcast %167 : f32 to vector<1x1xf32>
    %169 = arith.mulf %83, %168 : vector<1x1xf32>
    %170 = arith.addf %166, %169 : vector<1x1xf32>
    %c3_84 = arith.constant 3 : index
    %c4_85 = arith.constant 4 : index
    %171 = memref.load %arg6[%c3_84, %c4_85] : memref<4x18xf32, #tpu.memory_space<smem>>
    %172 = vector.broadcast %171 : f32 to vector<1x1xf32>
    %173 = arith.mulf %84, %172 : vector<1x1xf32>
    %174 = arith.addf %170, %173 : vector<1x1xf32>
    %c0_86 = arith.constant 0 : index
    %c5 = arith.constant 5 : index
    %175 = memref.load %arg6[%c0_86, %c5] : memref<4x18xf32, #tpu.memory_space<smem>>
    %176 = vector.broadcast %175 : f32 to vector<1x1xf32>
    %177 = arith.mulf %81, %176 : vector<1x1xf32>
    %c1_87 = arith.constant 1 : index
    %c5_88 = arith.constant 5 : index
    %178 = memref.load %arg6[%c1_87, %c5_88] : memref<4x18xf32, #tpu.memory_space<smem>>
    %179 = vector.broadcast %178 : f32 to vector<1x1xf32>
    %180 = arith.mulf %82, %179 : vector<1x1xf32>
    %181 = arith.addf %177, %180 : vector<1x1xf32>
    %c2_89 = arith.constant 2 : index
    %c5_90 = arith.constant 5 : index
    %182 = memref.load %arg6[%c2_89, %c5_90] : memref<4x18xf32, #tpu.memory_space<smem>>
    %183 = vector.broadcast %182 : f32 to vector<1x1xf32>
    %184 = arith.mulf %83, %183 : vector<1x1xf32>
    %185 = arith.addf %181, %184 : vector<1x1xf32>
    %c3_91 = arith.constant 3 : index
    %c5_92 = arith.constant 5 : index
    %186 = memref.load %arg6[%c3_91, %c5_92] : memref<4x18xf32, #tpu.memory_space<smem>>
    %187 = vector.broadcast %186 : f32 to vector<1x1xf32>
    %188 = arith.mulf %84, %187 : vector<1x1xf32>
    %189 = arith.addf %185, %188 : vector<1x1xf32>
    %c0_93 = arith.constant 0 : index
    %c6 = arith.constant 6 : index
    %190 = memref.load %arg6[%c0_93, %c6] : memref<4x18xf32, #tpu.memory_space<smem>>
    %191 = vector.broadcast %190 : f32 to vector<1x1xf32>
    %192 = arith.mulf %81, %191 : vector<1x1xf32>
    %c1_94 = arith.constant 1 : index
    %c6_95 = arith.constant 6 : index
    %193 = memref.load %arg6[%c1_94, %c6_95] : memref<4x18xf32, #tpu.memory_space<smem>>
    %194 = vector.broadcast %193 : f32 to vector<1x1xf32>
    %195 = arith.mulf %82, %194 : vector<1x1xf32>
    %196 = arith.addf %192, %195 : vector<1x1xf32>
    %c2_96 = arith.constant 2 : index
    %c6_97 = arith.constant 6 : index
    %197 = memref.load %arg6[%c2_96, %c6_97] : memref<4x18xf32, #tpu.memory_space<smem>>
    %198 = vector.broadcast %197 : f32 to vector<1x1xf32>
    %199 = arith.mulf %83, %198 : vector<1x1xf32>
    %200 = arith.addf %196, %199 : vector<1x1xf32>
    %c3_98 = arith.constant 3 : index
    %c6_99 = arith.constant 6 : index
    %201 = memref.load %arg6[%c3_98, %c6_99] : memref<4x18xf32, #tpu.memory_space<smem>>
    %202 = vector.broadcast %201 : f32 to vector<1x1xf32>
    %203 = arith.mulf %84, %202 : vector<1x1xf32>
    %204 = arith.addf %200, %203 : vector<1x1xf32>
    %c0_100 = arith.constant 0 : index
    %c7 = arith.constant 7 : index
    %205 = memref.load %arg6[%c0_100, %c7] : memref<4x18xf32, #tpu.memory_space<smem>>
    %206 = vector.broadcast %205 : f32 to vector<1x1xf32>
    %207 = arith.mulf %81, %206 : vector<1x1xf32>
    %c1_101 = arith.constant 1 : index
    %c7_102 = arith.constant 7 : index
    %208 = memref.load %arg6[%c1_101, %c7_102] : memref<4x18xf32, #tpu.memory_space<smem>>
    %209 = vector.broadcast %208 : f32 to vector<1x1xf32>
    %210 = arith.mulf %82, %209 : vector<1x1xf32>
    %211 = arith.addf %207, %210 : vector<1x1xf32>
    %c2_103 = arith.constant 2 : index
    %c7_104 = arith.constant 7 : index
    %212 = memref.load %arg6[%c2_103, %c7_104] : memref<4x18xf32, #tpu.memory_space<smem>>
    %213 = vector.broadcast %212 : f32 to vector<1x1xf32>
    %214 = arith.mulf %83, %213 : vector<1x1xf32>
    %215 = arith.addf %211, %214 : vector<1x1xf32>
    %c3_105 = arith.constant 3 : index
    %c7_106 = arith.constant 7 : index
    %216 = memref.load %arg6[%c3_105, %c7_106] : memref<4x18xf32, #tpu.memory_space<smem>>
    %217 = vector.broadcast %216 : f32 to vector<1x1xf32>
    %218 = arith.mulf %84, %217 : vector<1x1xf32>
    %219 = arith.addf %215, %218 : vector<1x1xf32>
    %c0_107 = arith.constant 0 : index
    %c8 = arith.constant 8 : index
    %220 = memref.load %arg6[%c0_107, %c8] : memref<4x18xf32, #tpu.memory_space<smem>>
    %221 = vector.broadcast %220 : f32 to vector<1x1xf32>
    %222 = arith.mulf %81, %221 : vector<1x1xf32>
    %c1_108 = arith.constant 1 : index
    %c8_109 = arith.constant 8 : index
    %223 = memref.load %arg6[%c1_108, %c8_109] : memref<4x18xf32, #tpu.memory_space<smem>>
    %224 = vector.broadcast %223 : f32 to vector<1x1xf32>
    %225 = arith.mulf %82, %224 : vector<1x1xf32>
    %226 = arith.addf %222, %225 : vector<1x1xf32>
    %c2_110 = arith.constant 2 : index
    %c8_111 = arith.constant 8 : index
    %227 = memref.load %arg6[%c2_110, %c8_111] : memref<4x18xf32, #tpu.memory_space<smem>>
    %228 = vector.broadcast %227 : f32 to vector<1x1xf32>
    %229 = arith.mulf %83, %228 : vector<1x1xf32>
    %230 = arith.addf %226, %229 : vector<1x1xf32>
    %c3_112 = arith.constant 3 : index
    %c8_113 = arith.constant 8 : index
    %231 = memref.load %arg6[%c3_112, %c8_113] : memref<4x18xf32, #tpu.memory_space<smem>>
    %232 = vector.broadcast %231 : f32 to vector<1x1xf32>
    %233 = arith.mulf %84, %232 : vector<1x1xf32>
    %234 = arith.addf %230, %233 : vector<1x1xf32>
    %c0_114 = arith.constant 0 : index
    %c9 = arith.constant 9 : index
    %235 = memref.load %arg6[%c0_114, %c9] : memref<4x18xf32, #tpu.memory_space<smem>>
    %236 = vector.broadcast %235 : f32 to vector<1x1xf32>
    %237 = arith.mulf %81, %236 : vector<1x1xf32>
    %c1_115 = arith.constant 1 : index
    %c9_116 = arith.constant 9 : index
    %238 = memref.load %arg6[%c1_115, %c9_116] : memref<4x18xf32, #tpu.memory_space<smem>>
    %239 = vector.broadcast %238 : f32 to vector<1x1xf32>
    %240 = arith.mulf %82, %239 : vector<1x1xf32>
    %241 = arith.addf %237, %240 : vector<1x1xf32>
    %c2_117 = arith.constant 2 : index
    %c9_118 = arith.constant 9 : index
    %242 = memref.load %arg6[%c2_117, %c9_118] : memref<4x18xf32, #tpu.memory_space<smem>>
    %243 = vector.broadcast %242 : f32 to vector<1x1xf32>
    %244 = arith.mulf %83, %243 : vector<1x1xf32>
    %245 = arith.addf %241, %244 : vector<1x1xf32>
    %c3_119 = arith.constant 3 : index
    %c9_120 = arith.constant 9 : index
    %246 = memref.load %arg6[%c3_119, %c9_120] : memref<4x18xf32, #tpu.memory_space<smem>>
    %247 = vector.broadcast %246 : f32 to vector<1x1xf32>
    %248 = arith.mulf %84, %247 : vector<1x1xf32>
    %249 = arith.addf %245, %248 : vector<1x1xf32>
    %c0_121 = arith.constant 0 : index
    %c10 = arith.constant 10 : index
    %250 = memref.load %arg6[%c0_121, %c10] : memref<4x18xf32, #tpu.memory_space<smem>>
    %251 = vector.broadcast %250 : f32 to vector<1x1xf32>
    %252 = arith.mulf %81, %251 : vector<1x1xf32>
    %c1_122 = arith.constant 1 : index
    %c10_123 = arith.constant 10 : index
    %253 = memref.load %arg6[%c1_122, %c10_123] : memref<4x18xf32, #tpu.memory_space<smem>>
    %254 = vector.broadcast %253 : f32 to vector<1x1xf32>
    %255 = arith.mulf %82, %254 : vector<1x1xf32>
    %256 = arith.addf %252, %255 : vector<1x1xf32>
    %c2_124 = arith.constant 2 : index
    %c10_125 = arith.constant 10 : index
    %257 = memref.load %arg6[%c2_124, %c10_125] : memref<4x18xf32, #tpu.memory_space<smem>>
    %258 = vector.broadcast %257 : f32 to vector<1x1xf32>
    %259 = arith.mulf %83, %258 : vector<1x1xf32>
    %260 = arith.addf %256, %259 : vector<1x1xf32>
    %c3_126 = arith.constant 3 : index
    %c10_127 = arith.constant 10 : index
    %261 = memref.load %arg6[%c3_126, %c10_127] : memref<4x18xf32, #tpu.memory_space<smem>>
    %262 = vector.broadcast %261 : f32 to vector<1x1xf32>
    %263 = arith.mulf %84, %262 : vector<1x1xf32>
    %264 = arith.addf %260, %263 : vector<1x1xf32>
    %c0_128 = arith.constant 0 : index
    %c11 = arith.constant 11 : index
    %265 = memref.load %arg6[%c0_128, %c11] : memref<4x18xf32, #tpu.memory_space<smem>>
    %266 = vector.broadcast %265 : f32 to vector<1x1xf32>
    %267 = arith.mulf %81, %266 : vector<1x1xf32>
    %c1_129 = arith.constant 1 : index
    %c11_130 = arith.constant 11 : index
    %268 = memref.load %arg6[%c1_129, %c11_130] : memref<4x18xf32, #tpu.memory_space<smem>>
    %269 = vector.broadcast %268 : f32 to vector<1x1xf32>
    %270 = arith.mulf %82, %269 : vector<1x1xf32>
    %271 = arith.addf %267, %270 : vector<1x1xf32>
    %c2_131 = arith.constant 2 : index
    %c11_132 = arith.constant 11 : index
    %272 = memref.load %arg6[%c2_131, %c11_132] : memref<4x18xf32, #tpu.memory_space<smem>>
    %273 = vector.broadcast %272 : f32 to vector<1x1xf32>
    %274 = arith.mulf %83, %273 : vector<1x1xf32>
    %275 = arith.addf %271, %274 : vector<1x1xf32>
    %c3_133 = arith.constant 3 : index
    %c11_134 = arith.constant 11 : index
    %276 = memref.load %arg6[%c3_133, %c11_134] : memref<4x18xf32, #tpu.memory_space<smem>>
    %277 = vector.broadcast %276 : f32 to vector<1x1xf32>
    %278 = arith.mulf %84, %277 : vector<1x1xf32>
    %279 = arith.addf %275, %278 : vector<1x1xf32>
    %c0_135 = arith.constant 0 : index
    %c12 = arith.constant 12 : index
    %280 = memref.load %arg6[%c0_135, %c12] : memref<4x18xf32, #tpu.memory_space<smem>>
    %281 = vector.broadcast %280 : f32 to vector<1x1xf32>
    %282 = arith.mulf %81, %281 : vector<1x1xf32>
    %c1_136 = arith.constant 1 : index
    %c12_137 = arith.constant 12 : index
    %283 = memref.load %arg6[%c1_136, %c12_137] : memref<4x18xf32, #tpu.memory_space<smem>>
    %284 = vector.broadcast %283 : f32 to vector<1x1xf32>
    %285 = arith.mulf %82, %284 : vector<1x1xf32>
    %286 = arith.addf %282, %285 : vector<1x1xf32>
    %c2_138 = arith.constant 2 : index
    %c12_139 = arith.constant 12 : index
    %287 = memref.load %arg6[%c2_138, %c12_139] : memref<4x18xf32, #tpu.memory_space<smem>>
    %288 = vector.broadcast %287 : f32 to vector<1x1xf32>
    %289 = arith.mulf %83, %288 : vector<1x1xf32>
    %290 = arith.addf %286, %289 : vector<1x1xf32>
    %c3_140 = arith.constant 3 : index
    %c12_141 = arith.constant 12 : index
    %291 = memref.load %arg6[%c3_140, %c12_141] : memref<4x18xf32, #tpu.memory_space<smem>>
    %292 = vector.broadcast %291 : f32 to vector<1x1xf32>
    %293 = arith.mulf %84, %292 : vector<1x1xf32>
    %294 = arith.addf %290, %293 : vector<1x1xf32>
    %c0_142 = arith.constant 0 : index
    %c13 = arith.constant 13 : index
    %295 = memref.load %arg6[%c0_142, %c13] : memref<4x18xf32, #tpu.memory_space<smem>>
    %296 = vector.broadcast %295 : f32 to vector<1x1xf32>
    %297 = arith.mulf %81, %296 : vector<1x1xf32>
    %c1_143 = arith.constant 1 : index
    %c13_144 = arith.constant 13 : index
    %298 = memref.load %arg6[%c1_143, %c13_144] : memref<4x18xf32, #tpu.memory_space<smem>>
    %299 = vector.broadcast %298 : f32 to vector<1x1xf32>
    %300 = arith.mulf %82, %299 : vector<1x1xf32>
    %301 = arith.addf %297, %300 : vector<1x1xf32>
    %c2_145 = arith.constant 2 : index
    %c13_146 = arith.constant 13 : index
    %302 = memref.load %arg6[%c2_145, %c13_146] : memref<4x18xf32, #tpu.memory_space<smem>>
    %303 = vector.broadcast %302 : f32 to vector<1x1xf32>
    %304 = arith.mulf %83, %303 : vector<1x1xf32>
    %305 = arith.addf %301, %304 : vector<1x1xf32>
    %c3_147 = arith.constant 3 : index
    %c13_148 = arith.constant 13 : index
    %306 = memref.load %arg6[%c3_147, %c13_148] : memref<4x18xf32, #tpu.memory_space<smem>>
    %307 = vector.broadcast %306 : f32 to vector<1x1xf32>
    %308 = arith.mulf %84, %307 : vector<1x1xf32>
    %309 = arith.addf %305, %308 : vector<1x1xf32>
    %c0_149 = arith.constant 0 : index
    %c14 = arith.constant 14 : index
    %310 = memref.load %arg6[%c0_149, %c14] : memref<4x18xf32, #tpu.memory_space<smem>>
    %311 = vector.broadcast %310 : f32 to vector<1x1xf32>
    %312 = arith.mulf %81, %311 : vector<1x1xf32>
    %c1_150 = arith.constant 1 : index
    %c14_151 = arith.constant 14 : index
    %313 = memref.load %arg6[%c1_150, %c14_151] : memref<4x18xf32, #tpu.memory_space<smem>>
    %314 = vector.broadcast %313 : f32 to vector<1x1xf32>
    %315 = arith.mulf %82, %314 : vector<1x1xf32>
    %316 = arith.addf %312, %315 : vector<1x1xf32>
    %c2_152 = arith.constant 2 : index
    %c14_153 = arith.constant 14 : index
    %317 = memref.load %arg6[%c2_152, %c14_153] : memref<4x18xf32, #tpu.memory_space<smem>>
    %318 = vector.broadcast %317 : f32 to vector<1x1xf32>
    %319 = arith.mulf %83, %318 : vector<1x1xf32>
    %320 = arith.addf %316, %319 : vector<1x1xf32>
    %c3_154 = arith.constant 3 : index
    %c14_155 = arith.constant 14 : index
    %321 = memref.load %arg6[%c3_154, %c14_155] : memref<4x18xf32, #tpu.memory_space<smem>>
    %322 = vector.broadcast %321 : f32 to vector<1x1xf32>
    %323 = arith.mulf %84, %322 : vector<1x1xf32>
    %324 = arith.addf %320, %323 : vector<1x1xf32>
    %c0_156 = arith.constant 0 : index
    %c15 = arith.constant 15 : index
    %325 = memref.load %arg6[%c0_156, %c15] : memref<4x18xf32, #tpu.memory_space<smem>>
    %326 = vector.broadcast %325 : f32 to vector<1x1xf32>
    %327 = arith.mulf %81, %326 : vector<1x1xf32>
    %c1_157 = arith.constant 1 : index
    %c15_158 = arith.constant 15 : index
    %328 = memref.load %arg6[%c1_157, %c15_158] : memref<4x18xf32, #tpu.memory_space<smem>>
    %329 = vector.broadcast %328 : f32 to vector<1x1xf32>
    %330 = arith.mulf %82, %329 : vector<1x1xf32>
    %331 = arith.addf %327, %330 : vector<1x1xf32>
    %c2_159 = arith.constant 2 : index
    %c15_160 = arith.constant 15 : index
    %332 = memref.load %arg6[%c2_159, %c15_160] : memref<4x18xf32, #tpu.memory_space<smem>>
    %333 = vector.broadcast %332 : f32 to vector<1x1xf32>
    %334 = arith.mulf %83, %333 : vector<1x1xf32>
    %335 = arith.addf %331, %334 : vector<1x1xf32>
    %c3_161 = arith.constant 3 : index
    %c15_162 = arith.constant 15 : index
    %336 = memref.load %arg6[%c3_161, %c15_162] : memref<4x18xf32, #tpu.memory_space<smem>>
    %337 = vector.broadcast %336 : f32 to vector<1x1xf32>
    %338 = arith.mulf %84, %337 : vector<1x1xf32>
    %339 = arith.addf %335, %338 : vector<1x1xf32>
    %c0_163 = arith.constant 0 : index
    %c16 = arith.constant 16 : index
    %340 = memref.load %arg6[%c0_163, %c16] : memref<4x18xf32, #tpu.memory_space<smem>>
    %341 = vector.broadcast %340 : f32 to vector<1x1xf32>
    %342 = arith.mulf %81, %341 : vector<1x1xf32>
    %c1_164 = arith.constant 1 : index
    %c16_165 = arith.constant 16 : index
    %343 = memref.load %arg6[%c1_164, %c16_165] : memref<4x18xf32, #tpu.memory_space<smem>>
    %344 = vector.broadcast %343 : f32 to vector<1x1xf32>
    %345 = arith.mulf %82, %344 : vector<1x1xf32>
    %346 = arith.addf %342, %345 : vector<1x1xf32>
    %c2_166 = arith.constant 2 : index
    %c16_167 = arith.constant 16 : index
    %347 = memref.load %arg6[%c2_166, %c16_167] : memref<4x18xf32, #tpu.memory_space<smem>>
    %348 = vector.broadcast %347 : f32 to vector<1x1xf32>
    %349 = arith.mulf %83, %348 : vector<1x1xf32>
    %350 = arith.addf %346, %349 : vector<1x1xf32>
    %c3_168 = arith.constant 3 : index
    %c16_169 = arith.constant 16 : index
    %351 = memref.load %arg6[%c3_168, %c16_169] : memref<4x18xf32, #tpu.memory_space<smem>>
    %352 = vector.broadcast %351 : f32 to vector<1x1xf32>
    %353 = arith.mulf %84, %352 : vector<1x1xf32>
    %354 = arith.addf %350, %353 : vector<1x1xf32>
    %c0_170 = arith.constant 0 : index
    %c17 = arith.constant 17 : index
    %355 = memref.load %arg6[%c0_170, %c17] : memref<4x18xf32, #tpu.memory_space<smem>>
    %356 = vector.broadcast %355 : f32 to vector<1x1xf32>
    %357 = arith.mulf %81, %356 : vector<1x1xf32>
    %c1_171 = arith.constant 1 : index
    %c17_172 = arith.constant 17 : index
    %358 = memref.load %arg6[%c1_171, %c17_172] : memref<4x18xf32, #tpu.memory_space<smem>>
    %359 = vector.broadcast %358 : f32 to vector<1x1xf32>
    %360 = arith.mulf %82, %359 : vector<1x1xf32>
    %361 = arith.addf %357, %360 : vector<1x1xf32>
    %c2_173 = arith.constant 2 : index
    %c17_174 = arith.constant 17 : index
    %362 = memref.load %arg6[%c2_173, %c17_174] : memref<4x18xf32, #tpu.memory_space<smem>>
    %363 = vector.broadcast %362 : f32 to vector<1x1xf32>
    %364 = arith.mulf %83, %363 : vector<1x1xf32>
    %365 = arith.addf %361, %364 : vector<1x1xf32>
    %c3_175 = arith.constant 3 : index
    %c17_176 = arith.constant 17 : index
    %366 = memref.load %arg6[%c3_175, %c17_176] : memref<4x18xf32, #tpu.memory_space<smem>>
    %367 = vector.broadcast %366 : f32 to vector<1x1xf32>
    %368 = arith.mulf %84, %367 : vector<1x1xf32>
    %369 = arith.addf %365, %368 : vector<1x1xf32>
    %c0_177 = arith.constant 0 : index
    %c0_178 = arith.constant 0 : index
    %370 = vector.load %arg2[%c0_177, %c0_178] : memref<2x256xf32, #tpu.memory_space<vmem>>, vector<1x256xf32>
    %c1_179 = arith.constant 1 : index
    %c0_180 = arith.constant 0 : index
    %371 = vector.load %arg2[%c1_179, %c0_180] : memref<2x256xf32, #tpu.memory_space<vmem>>, vector<1x256xf32>
    %372 = vector.shape_cast %99 : vector<1x1xf32> to vector<1x1xf32>
    %373 = vector.broadcast %372 : vector<1x1xf32> to vector<1x256xf32>
    %c0_181 = arith.constant 0 : index
    %c111 = arith.constant 111 : index
    %374 = vector.load %arg9[%c0_181, %c111] : memref<2x512xf32, #tpu.memory_space<vmem>>, vector<1x256xf32>
    %375 = arith.mulf %374, %370 : vector<1x256xf32>
    %376 = vector.broadcast %114 : vector<1x1xf32> to vector<1x256xf32>
    %377 = arith.mulf %376, %375 : vector<1x256xf32>
    %378 = arith.addf %373, %377 : vector<1x256xf32>
    %c0_182 = arith.constant 0 : index
    %c112 = arith.constant 112 : index
    %379 = vector.load %arg9[%c0_182, %c112] : memref<2x512xf32, #tpu.memory_space<vmem>>, vector<1x256xf32>
    %380 = vector.broadcast %129 : vector<1x1xf32> to vector<1x256xf32>
    %381 = arith.mulf %380, %379 : vector<1x256xf32>
    %382 = arith.addf %378, %381 : vector<1x256xf32>
    %c0_183 = arith.constant 0 : index
    %c113 = arith.constant 113 : index
    %383 = vector.load %arg9[%c0_183, %c113] : memref<2x512xf32, #tpu.memory_space<vmem>>, vector<1x256xf32>
    %384 = arith.mulf %383, %371 : vector<1x256xf32>
    %385 = vector.broadcast %144 : vector<1x1xf32> to vector<1x256xf32>
    %386 = arith.mulf %385, %384 : vector<1x256xf32>
    %387 = arith.addf %382, %386 : vector<1x256xf32>
    %c0_184 = arith.constant 0 : index
    %c127 = arith.constant 127 : index
    %388 = vector.load %arg9[%c0_184, %c127] : memref<2x512xf32, #tpu.memory_space<vmem>>, vector<1x256xf32>
    %389 = arith.mulf %388, %370 : vector<1x256xf32>
    %390 = vector.broadcast %159 : vector<1x1xf32> to vector<1x256xf32>
    %391 = arith.mulf %390, %389 : vector<1x256xf32>
    %392 = arith.addf %387, %391 : vector<1x256xf32>
    %c0_185 = arith.constant 0 : index
    %c128_186 = arith.constant 128 : index
    %393 = vector.load %arg9[%c0_185, %c128_186] : memref<2x512xf32, #tpu.memory_space<vmem>>, vector<1x256xf32>
    %394 = vector.broadcast %174 : vector<1x1xf32> to vector<1x256xf32>
    %395 = arith.mulf %394, %393 : vector<1x256xf32>
    %396 = arith.addf %392, %395 : vector<1x256xf32>
    %c0_187 = arith.constant 0 : index
    %c129 = arith.constant 129 : index
    %397 = vector.load %arg9[%c0_187, %c129] : memref<2x512xf32, #tpu.memory_space<vmem>>, vector<1x256xf32>
    %398 = arith.mulf %397, %371 : vector<1x256xf32>
    %399 = vector.broadcast %189 : vector<1x1xf32> to vector<1x256xf32>
    %400 = arith.mulf %399, %398 : vector<1x256xf32>
    %401 = arith.addf %396, %400 : vector<1x256xf32>
    %c0_188 = arith.constant 0 : index
    %c143 = arith.constant 143 : index
    %402 = vector.load %arg9[%c0_188, %c143] : memref<2x512xf32, #tpu.memory_space<vmem>>, vector<1x256xf32>
    %403 = arith.mulf %402, %370 : vector<1x256xf32>
    %404 = vector.broadcast %204 : vector<1x1xf32> to vector<1x256xf32>
    %405 = arith.mulf %404, %403 : vector<1x256xf32>
    %406 = arith.addf %401, %405 : vector<1x256xf32>
    %c0_189 = arith.constant 0 : index
    %c144 = arith.constant 144 : index
    %407 = vector.load %arg9[%c0_189, %c144] : memref<2x512xf32, #tpu.memory_space<vmem>>, vector<1x256xf32>
    %408 = vector.broadcast %219 : vector<1x1xf32> to vector<1x256xf32>
    %409 = arith.mulf %408, %407 : vector<1x256xf32>
    %410 = arith.addf %406, %409 : vector<1x256xf32>
    %c0_190 = arith.constant 0 : index
    %c145 = arith.constant 145 : index
    %411 = vector.load %arg9[%c0_190, %c145] : memref<2x512xf32, #tpu.memory_space<vmem>>, vector<1x256xf32>
    %412 = arith.mulf %411, %371 : vector<1x256xf32>
    %413 = vector.broadcast %234 : vector<1x1xf32> to vector<1x256xf32>
    %414 = arith.mulf %413, %412 : vector<1x256xf32>
    %415 = arith.addf %410, %414 : vector<1x256xf32>
    %c1_191 = arith.constant 1 : index
    %c111_192 = arith.constant 111 : index
    %416 = vector.load %arg9[%c1_191, %c111_192] : memref<2x512xf32, #tpu.memory_space<vmem>>, vector<1x256xf32>
    %417 = arith.mulf %416, %370 : vector<1x256xf32>
    %418 = vector.broadcast %249 : vector<1x1xf32> to vector<1x256xf32>
    %419 = arith.mulf %418, %417 : vector<1x256xf32>
    %420 = arith.addf %415, %419 : vector<1x256xf32>
    %c1_193 = arith.constant 1 : index
    %c112_194 = arith.constant 112 : index
    %421 = vector.load %arg9[%c1_193, %c112_194] : memref<2x512xf32, #tpu.memory_space<vmem>>, vector<1x256xf32>
    %422 = vector.broadcast %264 : vector<1x1xf32> to vector<1x256xf32>
    %423 = arith.mulf %422, %421 : vector<1x256xf32>
    %424 = arith.addf %420, %423 : vector<1x256xf32>
    %c1_195 = arith.constant 1 : index
    %c113_196 = arith.constant 113 : index
    %425 = vector.load %arg9[%c1_195, %c113_196] : memref<2x512xf32, #tpu.memory_space<vmem>>, vector<1x256xf32>
    %426 = arith.mulf %425, %371 : vector<1x256xf32>
    %427 = vector.broadcast %279 : vector<1x1xf32> to vector<1x256xf32>
    %428 = arith.mulf %427, %426 : vector<1x256xf32>
    %429 = arith.addf %424, %428 : vector<1x256xf32>
    %c1_197 = arith.constant 1 : index
    %c127_198 = arith.constant 127 : index
    %430 = vector.load %arg9[%c1_197, %c127_198] : memref<2x512xf32, #tpu.memory_space<vmem>>, vector<1x256xf32>
    %431 = arith.mulf %430, %370 : vector<1x256xf32>
    %432 = vector.broadcast %294 : vector<1x1xf32> to vector<1x256xf32>
    %433 = arith.mulf %432, %431 : vector<1x256xf32>
    %434 = arith.addf %429, %433 : vector<1x256xf32>
    %c1_199 = arith.constant 1 : index
    %c128_200 = arith.constant 128 : index
    %435 = vector.load %arg9[%c1_199, %c128_200] : memref<2x512xf32, #tpu.memory_space<vmem>>, vector<1x256xf32>
    %436 = vector.broadcast %309 : vector<1x1xf32> to vector<1x256xf32>
    %437 = arith.mulf %436, %435 : vector<1x256xf32>
    %438 = arith.addf %434, %437 : vector<1x256xf32>
    %c1_201 = arith.constant 1 : index
    %c129_202 = arith.constant 129 : index
    %439 = vector.load %arg9[%c1_201, %c129_202] : memref<2x512xf32, #tpu.memory_space<vmem>>, vector<1x256xf32>
    %440 = arith.mulf %439, %371 : vector<1x256xf32>
    %441 = vector.broadcast %324 : vector<1x1xf32> to vector<1x256xf32>
    %442 = arith.mulf %441, %440 : vector<1x256xf32>
    %443 = arith.addf %438, %442 : vector<1x256xf32>
    %c1_203 = arith.constant 1 : index
    %c143_204 = arith.constant 143 : index
    %444 = vector.load %arg9[%c1_203, %c143_204] : memref<2x512xf32, #tpu.memory_space<vmem>>, vector<1x256xf32>
    %445 = arith.mulf %444, %370 : vector<1x256xf32>
    %446 = vector.broadcast %339 : vector<1x1xf32> to vector<1x256xf32>
    %447 = arith.mulf %446, %445 : vector<1x256xf32>
    %448 = arith.addf %443, %447 : vector<1x256xf32>
    %c1_205 = arith.constant 1 : index
    %c144_206 = arith.constant 144 : index
    %449 = vector.load %arg9[%c1_205, %c144_206] : memref<2x512xf32, #tpu.memory_space<vmem>>, vector<1x256xf32>
    %450 = vector.broadcast %354 : vector<1x1xf32> to vector<1x256xf32>
    %451 = arith.mulf %450, %449 : vector<1x256xf32>
    %452 = arith.addf %448, %451 : vector<1x256xf32>
    %c1_207 = arith.constant 1 : index
    %c145_208 = arith.constant 145 : index
    %453 = vector.load %arg9[%c1_207, %c145_208] : memref<2x512xf32, #tpu.memory_space<vmem>>, vector<1x256xf32>
    %454 = arith.mulf %453, %371 : vector<1x256xf32>
    %455 = vector.broadcast %369 : vector<1x1xf32> to vector<1x256xf32>
    %456 = arith.mulf %455, %454 : vector<1x256xf32>
    %457 = arith.addf %452, %456 : vector<1x256xf32>
    %cst_209 = arith.constant 0.000000e+00 : f32
    %458 = vector.broadcast %cst_209 : f32 to vector<1x256xf32>
    %459 = arith.subf %458, %457 : vector<1x256xf32>
    %460 = math.exp %459 : vector<1x256xf32>
    %cst_210 = arith.constant 1.000000e+00 : f32
    %461 = vector.broadcast %cst_210 : f32 to vector<1x256xf32>
    %462 = arith.addf %461, %460 : vector<1x256xf32>
    %463 = tpu.reciprocal %462 : vector<1x256xf32> -> vector<1x256xf32>
    %c0_211 = arith.constant 0 : index
    %c0_212 = arith.constant 0 : index
    %464 = vector.load %arg10[%c0_211, %c0_212] : memref<1x256xf32, #tpu.memory_space<vmem>>, vector<1x256xf32>
    tpu.vector_store %arg10[%c0_211, %c0_212], %463 {strides = array<i32>} : memref<1x256xf32, #tpu.memory_space<vmem>>, vector<1x256xf32>,
    %c0_213 = arith.constant 0 : index
    %c0_214 = arith.constant 0 : index
    %465 = vector.load %arg10[%c0_213, %c0_214] : memref<1x256xf32, #tpu.memory_space<vmem>>, vector<1x256xf32>
    %466 = vector.shape_cast %465 : vector<1x256xf32> to vector<1x256xf32>
    %467 = vector.broadcast %466 : vector<1x256xf32> to vector<4x256xf32>
    %c0_215 = arith.constant 0 : index
    %c0_216 = arith.constant 0 : index
    %c0_217 = arith.constant 0 : index
    %468 = vector.load %arg1[%c0_215, %c0_216, %c0_217] : memref<1x4x256xf32, #tpu.memory_space<vmem>>, vector<1x4x256xf32>
    %469 = vector.shape_cast %468 : vector<1x4x256xf32> to vector<4x256xf32>
    %470 = arith.mulf %469, %467 : vector<4x256xf32>
    %c0_218 = arith.constant 0 : index
    %c0_219 = arith.constant 0 : index
    %c0_220 = arith.constant 0 : index
    %471 = vector.load %arg8[%c0_218, %c0_219, %c0_220] : memref<1x4x256xf32, #tpu.memory_space<vmem>>, vector<1x4x256xf32>
    %472 = vector.shape_cast %471 : vector<1x4x256xf32> to vector<4x256xf32>
    %473 = vector.shape_cast %470 : vector<4x256xf32> to vector<1x4x256xf32>
    tpu.vector_store %arg8[%c0_218, %c0_219, %c0_220], %473 {strides = array<i32>} : memref<1x4x256xf32, #tpu.memory_space<vmem>>, vector<1x4x256xf32>,
    return
  }
  func.func @transform_0(%arg0: i32) -> (i32, i32, i32) {
    %c0_i32 = arith.constant 0 : i32
    %c0_i32_0 = arith.constant 0 : i32
    %c0_i32_1 = arith.constant 0 : i32
    return %arg0, %c0_i32, %c0_i32_0 : i32, i32, i32
  }
  func.func @transform_1(%arg0: i32) -> (i32, i32) {
    %c0_i32 = arith.constant 0 : i32
    %c0_i32_0 = arith.constant 0 : i32
    %c0_i32_1 = arith.constant 0 : i32
    return %c0_i32, %c0_i32_0 : i32, i32
  }
  func.func @transform_2(%arg0: i32) -> (i32, i32) {
    %c0_i32 = arith.constant 0 : i32
    %c0_i32_0 = arith.constant 0 : i32
    %c0_i32_1 = arith.constant 0 : i32
    return %c0_i32, %c0_i32_0 : i32, i32
  }
  func.func @transform_3(%arg0: i32) -> (i32, i32) {
    %c0_i32 = arith.constant 0 : i32
    %c0_i32_0 = arith.constant 0 : i32
    %c0_i32_1 = arith.constant 0 : i32
    return %c0_i32, %c0_i32_0 : i32, i32
  }
  func.func @transform_4(%arg0: i32) -> (i32, i32) {
    %c0_i32 = arith.constant 0 : i32
    %c0_i32_0 = arith.constant 0 : i32
    %c0_i32_1 = arith.constant 0 : i32
    return %c0_i32, %c0_i32_0 : i32, i32
  }
  func.func @transform_5(%arg0: i32) -> (i32, i32) {
    %c0_i32 = arith.constant 0 : i32
    %c0_i32_0 = arith.constant 0 : i32
    %c0_i32_1 = arith.constant 0 : i32
    return %c0_i32, %c0_i32_0 : i32, i32
  }
  func.func @transform_6(%arg0: i32) -> (i32, i32) {
    %c0_i32 = arith.constant 0 : i32
    %c0_i32_0 = arith.constant 0 : i32
    %c0_i32_1 = arith.constant 0 : i32
    return %c0_i32, %c0_i32_0 : i32, i32
  }
  func.func @transform_7(%arg0: i32) -> (i32, i32, i32) {
    %c0_i32 = arith.constant 0 : i32
    %c0_i32_0 = arith.constant 0 : i32
    %c0_i32_1 = arith.constant 0 : i32
    return %arg0, %c0_i32, %c0_i32_0 : i32, i32, i32
  }
}

</mosaic_0001>

<llo_original>
// kernel: spatial_attn_layer.1
$region0: #{spatial_attn_layer.1}
  #allocation0 [shape = 'u32[]', space=smem, size = 0x4, offset = 0x4, fixed_abs, tag = 'smem constant byte address 0x4 - core index']
  #allocation1 [shape = 'u32[144,128]{1,0:T(1,128)}', space=vmem, size = 0x12000, scoped, tag = 'internal scratch']
  #allocation2 [shape = 'f32[2,512]{1,0:T(2,128)}', space=vmem, size = 0x1000, scoped, tag = 'scratch operand']
  #allocation3 [shape = 'f32[1,256]{1,0:T(1,128)}', space=vmem, size = 0x400, scoped, tag = 'scratch operand']
  %s0 = inlined_call_operand.vmem [shape: f32[2,4,256], index: 0, kind: input, shape index: {}]
  %s1 = inlined_call_operand.vmem [shape: f32[2,256], index: 1, kind: input, shape index: {}]
  %s2 = inlined_call_operand.vmem [shape: f32[1,2], index: 2, kind: input, shape index: {}]
  %s3 = inlined_call_operand.vmem [shape: f32[1,4], index: 3, kind: input, shape index: {}]
  %s4 = inlined_call_operand.vmem [shape: f32[1,4], index: 4, kind: input, shape index: {}]
  %s5 = inlined_call_operand.vmem [shape: f32[4,18], index: 5, kind: input, shape index: {}]
  %s6 = inlined_call_operand.vmem [shape: f32[1,4], index: 6, kind: input, shape index: {}]
  %s7 = inlined_call_operand.vmem [shape: f32[2,4,256], index: 7, kind: output, shape index: {}]
  %s8 = sld [smem:[#allocation0]]
  $region81: #{spatial_attn_layer.1} parent=0
    _
  %s10 = ssub.s32 1, %s8
  %s11 = scalar_select 0, %s10, %s8
  $region1: #{spatial_attn_layer.1} parent=0
    #allocation4 [shape = 'u8[512]{0}', space=smem, size = 0x200, scoped, tag = 'input window, operand 2, single buffered']
    #allocation5 [shape = 's32[2]{0}', space=sflag, size = 0x8, scoped, tag = 'scoped memory for spatial_attn_layer.1']
    #allocation6 [shape = 'u8[512]{0}', space=smem, size = 0x200, scoped, tag = 'input window, operand 3, single buffered']
    #allocation7 [shape = 's32[1]{0}', space=sflag, size = 0x4, scoped, tag = 'scoped memory for spatial_attn_layer.1']
    #allocation8 [shape = 'u8[512]{0}', space=smem, size = 0x200, scoped, tag = 'input window, operand 4, single buffered']
    #allocation9 [shape = 'u8[2048]{0}', space=smem, size = 0x800, scoped, tag = 'input window, operand 5, single buffered']
    #allocation10 [shape = 's32[1]{0}', space=sflag, size = 0x4, scoped, tag = 'scoped memory for spatial_attn_layer.1']
    #allocation11 [shape = 'u8[512]{0}', space=smem, size = 0x200, scoped, tag = 'input window, operand 6, single buffered']
    %12 = vsyncpa [#allocation5], 0
    %13 = vsyncpa [#allocation7], 0
    %14 = vsyncpa [#allocation10], 0
    loop: start=0, step=1, limit=4
    $region2: #{spatial_attn_layer.1} parent=1 // loop_pre_header
      _
    $region3: #{spatial_attn_layer.1} parent=1 // loop_header
      %s16 = sphi 0, %s20
      %p17 = scmp.ge.s32.totalorder %s16, 4
      %s26 = sphi 0, %s28
      %s29 = sphi 0, %s26
      %s30 = sphi 0, %s29
      %s46 = sphi 0, %s30
      %s50 = sphi 0, %s50
      %s52 = sphi 0, %s50
      %s53 = sphi 0, %s52
      %s67 = sphi 0, %s53
      %s71 = sphi 0, %s71
      %s73 = sphi 0, %s71
      %s74 = sphi 0, %s73
      %s88 = sphi 0, %s74
      %s92 = sphi 0, %s92
      %s94 = sphi 0, %s92
      %s95 = sphi 0, %s94
      %s109 = sphi 0, %s95
      %s113 = sphi 0, %s113
      %s115 = sphi 0, %s113
      %s116 = sphi 0, %s115
      %s130 = sphi 0, %s116
      %s134 = sphi 0, %s134
      %s136 = sphi 0, %s134
      %s137 = sphi 0, %s136
      %s151 = sphi 0, %s137
      %s155 = sphi 0, %s155
      %s157 = sphi 0, %s155
      %s158 = sphi 0, %s157
      %s172 = sphi 0, %s158
      %s178 = sphi 0, %s180
      %s181 = sphi 0, %s178
      %s182 = sphi 0, %s181
      %s198 = sphi 0, %s182
    $region4: #{spatial_attn_layer.1} parent=1 // loop_header_branch
      %19 = sbr.rel (%p17) target = $region8
    $region5: #{spatial_attn_layer.1} parent=1 // loop_body
      %s21 = ssub.s32 %s16, 1
      %s22 = ssub.s32 %s16, 2
      %s23 = sadd.s32 %s16, 1
      %s24 = ssub.s32 %s16, %s23
      %p25 = scmp.eq.s32.totalorder %s24, 0
      %s27 = sadd.s32 %s26, 1
      %s28 = scalar_select %p25, %s26, %s27
      %p31 = pneg %p25
      %p32 = scmp.eq.s32.totalorder %s16, 1
      %p33 = por %p31, %p32
      %p34 = scmp.ne.s32.totalorder %s26, %s29
      %p35 = scmp.eq.s32.totalorder %s16, 0
      %p36 = por %p34, %p35
      %p37 = scmp.ne.s32.totalorder %s26, %s29
      %p38 = scmp.eq.s32.totalorder %s21, 1
      %p39 = por %p37, %p38
      %p40 = scmp.ne.s32.totalorder %s29, %s30
      %p41 = scmp.eq.s32.totalorder %s21, 0
      %p42 = por %p40, %p41
      %p43 = scmp.ne.s32.totalorder %s29, %s30
      %p44 = scmp.eq.s32.totalorder %s22, 1
      %p45 = por %p43, %p44
      %p47 = scmp.ne.s32.totalorder %s30, %s46
      %p48 = scmp.eq.s32.totalorder %s22, 0
      %p49 = por %p47, %p48
      %s51 = sadd.s32 %s50, 1
      %p54 = scmp.eq.s32.totalorder %s16, 1
      %p55 = scmp.ne.s32.totalorder %s50, %s52
      %p56 = scmp.eq.s32.totalorder %s16, 0
      %p57 = por %p55, %p56
      %p58 = scmp.ne.s32.totalorder %s50, %s52
      %p59 = scmp.eq.s32.totalorder %s21, 1
      %p60 = por %p58, %p59
      %p61 = scmp.ne.s32.totalorder %s52, %s53
      %p62 = scmp.eq.s32.totalorder %s21, 0
      %p63 = por %p61, %p62
      %p64 = scmp.ne.s32.totalorder %s52, %s53
      %p65 = scmp.eq.s32.totalorder %s22, 1
      %p66 = por %p64, %p65
      %p68 = scmp.ne.s32.totalorder %s53, %s67
      %p69 = scmp.eq.s32.totalorder %s22, 0
      %p70 = por %p68, %p69
      %s72 = sadd.s32 %s71, 1
      %p75 = scmp.eq.s32.totalorder %s16, 1
      %p76 = scmp.ne.s32.totalorder %s71, %s73
      %p77 = scmp.eq.s32.totalorder %s16, 0
      %p78 = por %p76, %p77
      %p79 = scmp.ne.s32.totalorder %s71, %s73
      %p80 = scmp.eq.s32.totalorder %s21, 1
      %p81 = por %p79, %p80
      %p82 = scmp.ne.s32.totalorder %s73, %s74
      %p83 = scmp.eq.s32.totalorder %s21, 0
      %p84 = por %p82, %p83
      %p85 = scmp.ne.s32.totalorder %s73, %s74
      %p86 = scmp.eq.s32.totalorder %s22, 1
      %p87 = por %p85, %p86
      %p89 = scmp.ne.s32.totalorder %s74, %s88
      %p90 = scmp.eq.s32.totalorder %s22, 0
      %p91 = por %p89, %p90
      %s93 = sadd.s32 %s92, 1
      %p96 = scmp.eq.s32.totalorder %s16, 1
      %p97 = scmp.ne.s32.totalorder %s92, %s94
      %p98 = scmp.eq.s32.totalorder %s16, 0
      %p99 = por %p97, %p98
      %p100 = scmp.ne.s32.totalorder %s92, %s94
      %p101 = scmp.eq.s32.totalorder %s21, 1
      %p102 = por %p100, %p101
      %p103 = scmp.ne.s32.totalorder %s94, %s95
      %p104 = scmp.eq.s32.totalorder %s21, 0
      %p105 = por %p103, %p104
      %p106 = scmp.ne.s32.totalorder %s94, %s95
      %p107 = scmp.eq.s32.totalorder %s22, 1
      %p108 = por %p106, %p107
      %p110 = scmp.ne.s32.totalorder %s95, %s109
      %p111 = scmp.eq.s32.totalorder %s22, 0
      %p112 = por %p110, %p111
      %s114 = sadd.s32 %s113, 1
      %p117 = scmp.eq.s32.totalorder %s16, 1
      %p118 = scmp.ne.s32.totalorder %s113, %s115
      %p119 = scmp.eq.s32.totalorder %s16, 0
      %p120 = por %p118, %p119
      %p121 = scmp.ne.s32.totalorder %s113, %s115
      %p122 = scmp.eq.s32.totalorder %s21, 1
      %p123 = por %p121, %p122
      %p124 = scmp.ne.s32.totalorder %s115, %s116
      %p125 = scmp.eq.s32.totalorder %s21, 0
      %p126 = por %p124, %p125
      %p127 = scmp.ne.s32.totalorder %s115, %s116
      %p128 = scmp.eq.s32.totalorder %s22, 1
      %p129 = por %p127, %p128
      %p131 = scmp.ne.s32.totalorder %s116, %s130
      %p132 = scmp.eq.s32.totalorder %s22, 0
      %p133 = por %p131, %p132
      %s135 = sadd.s32 %s134, 1
      %p138 = scmp.eq.s32.totalorder %s16, 1
      %p139 = scmp.ne.s32.totalorder %s134, %s136
      %p140 = scmp.eq.s32.totalorder %s16, 0
      %p141 = por %p139, %p140
      %p142 = scmp.ne.s32.totalorder %s134, %s136
      %p143 = scmp.eq.s32.totalorder %s21, 1
      %p144 = por %p142, %p143
      %p145 = scmp.ne.s32.totalorder %s136, %s137
      %p146 = scmp.eq.s32.totalorder %s21, 0
      %p147 = por %p145, %p146
      %p148 = scmp.ne.s32.totalorder %s136, %s137
      %p149 = scmp.eq.s32.totalorder %s22, 1
      %p150 = por %p148, %p149
      %p152 = scmp.ne.s32.totalorder %s137, %s151
      %p153 = scmp.eq.s32.totalorder %s22, 0
      %p154 = por %p152, %p153
      %s156 = sadd.s32 %s155, 1
      %p159 = scmp.eq.s32.totalorder %s16, 1
      %p160 = scmp.ne.s32.totalorder %s155, %s157
      %p161 = scmp.eq.s32.totalorder %s16, 0
      %p162 = por %p160, %p161
      %p163 = scmp.ne.s32.totalorder %s155, %s157
      %p164 = scmp.eq.s32.totalorder %s21, 1
      %p165 = por %p163, %p164
      %p166 = scmp.ne.s32.totalorder %s157, %s158
      %p167 = scmp.eq.s32.totalorder %s21, 0
      %p168 = por %p166, %p167
      %p169 = scmp.ne.s32.totalorder %s157, %s158
      %p170 = scmp.eq.s32.totalorder %s22, 1
      %p171 = por %p169, %p170
      %p173 = scmp.ne.s32.totalorder %s158, %s172
      %p174 = scmp.eq.s32.totalorder %s22, 0
      %p175 = por %p173, %p174
      %s176 = ssub.s32 %s16, %s23
      %p177 = scmp.eq.s32.totalorder %s176, 0
      %s179 = sadd.s32 %s178, 1
      %s180 = scalar_select %p177, %s178, %s179
      %p183 = pneg %p177
      %p184 = scmp.eq.s32.totalorder %s16, 1
      %p185 = por %p183, %p184
      %p186 = scmp.ne.s32.totalorder %s178, %s181
      %p187 = scmp.eq.s32.totalorder %s16, 0
      %p188 = por %p186, %p187
      %p189 = scmp.ne.s32.totalorder %s178, %s181
      %p190 = scmp.eq.s32.totalorder %s21, 1
      %p191 = por %p189, %p190
      %p192 = scmp.ne.s32.totalorder %s181, %s182
      %p193 = scmp.eq.s32.totalorder %s21, 0
      %p194 = por %p192, %p193
      %p195 = scmp.ne.s32.totalorder %s181, %s182
      %p196 = scmp.eq.s32.totalorder %s22, 1
      %p197 = por %p195, %p196
      %p199 = scmp.ne.s32.totalorder %s182, %s198
      %p200 = scmp.eq.s32.totalorder %s22, 0
      %p201 = por %p199, %p200
      %p202 = scmp.le.s32.totalorder 1, %s16
      %p203 = scmp.lt.s32.totalorder %s16, 3
      %p204 = pnand %p202, %p203
      %p205 = pneg %p204
      // Predicated region
      $region9: #{spatial_attn_layer.1} parent=5 // pred_check
        _
      $region10: #{spatial_attn_layer.1} parent=5 // pred_check_branch
        %207 = sbr.rel (%p204) target = $region12
      $region11: #{spatial_attn_layer.1} parent=5 // pred_region
        %s208 = ssub.s32 %s16, 1
        // Predicated region
        $region13: #{spatial_attn_layer.1} parent=11 // pred_check
          %p209 = pneg %p63
        $region14: #{spatial_attn_layer.1} parent=11 // pred_check_branch
          %211 = sbr.rel (%p209) target = $region16
        $region15: #{spatial_attn_layer.1} parent=11 // pred_region
          _
        $region16: #{spatial_attn_layer.1} parent=11 // pred_fallthru
          _
        // Predicated region
        $region17: #{spatial_attn_layer.1} parent=11 // pred_check
          %p212 = pneg %p84
        $region18: #{spatial_attn_layer.1} parent=11 // pred_check_branch
          %214 = sbr.rel (%p212) target = $region20
        $region19: #{spatial_attn_layer.1} parent=11 // pred_region
          %s216 = ssub.s32 16, 16
          %217 = vsyncadd [#allocation5], %s216
          %s219 = sshll.u32 %s2, 4
          %s220 = int_to_ptr.vmem [resolvable:$true] %s219
          %222 = dma.vmem_to_smem %s220, 16, [#allocation4], [#allocation5]
        $region20: #{spatial_attn_layer.1} parent=11 // pred_fallthru
          _
        // Predicated region
        $region21: #{spatial_attn_layer.1} parent=11 // pred_check
          %p223 = pneg %p105
        $region22: #{spatial_attn_layer.1} parent=11 // pred_check_branch
          %225 = sbr.rel (%p223) target = $region24
        $region23: #{spatial_attn_layer.1} parent=11 // pred_region
          %s227 = ssub.s32 16, 16
          %228 = vsyncadd [#allocation7], %s227
          %s230 = sshll.u32 %s3, 4
          %s231 = int_to_ptr.vmem [resolvable:$true] %s230
          %233 = dma.vmem_to_smem %s231, 16, [#allocation6], [#allocation7]
        $region24: #{spatial_attn_layer.1} parent=11 // pred_fallthru
          _
        // Predicated region
        $region25: #{spatial_attn_layer.1} parent=11 // pred_check
          %p234 = pneg %p126
        $region26: #{spatial_attn_layer.1} parent=11 // pred_check_branch
          %236 = sbr.rel (%p234) target = $region28
        $region27: #{spatial_attn_layer.1} parent=11 // pred_region
          %s238 = ssub.s32 16, 16
          %239 = vsyncadd [#allocation7], %s238
          %s241 = sshll.u32 %s4, 4
          %s242 = int_to_ptr.vmem [resolvable:$true] %s241
          %244 = dma.vmem_to_smem %s242, 16, [#allocation8], [#allocation7]
        $region28: #{spatial_attn_layer.1} parent=11 // pred_fallthru
          _
        // Predicated region
        $region29: #{spatial_attn_layer.1} parent=11 // pred_check
          %p245 = pneg %p147
        $region30: #{spatial_attn_layer.1} parent=11 // pred_check_branch
          %247 = sbr.rel (%p245) target = $region32
        $region31: #{spatial_attn_layer.1} parent=11 // pred_region
          %s249 = ssub.s32 64, 64
          %250 = vsyncadd [#allocation10], %s249
          %s252 = sshll.u32 %s5, 4
          %s253 = int_to_ptr.vmem [resolvable:$true] %s252
          %255 = dma.vmem_to_smem %s253, 64, [#allocation9], [#allocation10]
        $region32: #{spatial_attn_layer.1} parent=11 // pred_fallthru
          _
        // Predicated region
        $region33: #{spatial_attn_layer.1} parent=11 // pred_check
          %p256 = pneg %p168
        $region34: #{spatial_attn_layer.1} parent=11 // pred_check_branch
          %258 = sbr.rel (%p256) target = $region36
        $region35: #{spatial_attn_layer.1} parent=11 // pred_region
          %s260 = ssub.s32 16, 16
          %261 = vsyncadd [#allocation10], %s260
          %s263 = sshll.u32 %s6, 4
          %s264 = int_to_ptr.vmem [resolvable:$true] %s263
          %266 = dma.vmem_to_smem %s264, 16, [#allocation11], [#allocation10]
        $region36: #{spatial_attn_layer.1} parent=11 // pred_fallthru
          _
      $region12: #{spatial_attn_layer.1} parent=5 // pred_fallthru
        _
      %p267 = scmp.lt.s32.totalorder %s16, 2
      // Predicated region
      $region37: #{spatial_attn_layer.1} parent=5 // pred_check
        %p268 = pneg %p267
      $region38: #{spatial_attn_layer.1} parent=5 // pred_check_branch
        %270 = sbr.rel (%p268) target = $region40
      $region39: #{spatial_attn_layer.1} parent=5 // pred_region
        // Predicated region
        $region41: #{spatial_attn_layer.1} parent=39 // pred_check
          %p271 = pneg %p36
        $region42: #{spatial_attn_layer.1} parent=39 // pred_check_branch
          %273 = sbr.rel (%p271) target = $region44
        $region43: #{spatial_attn_layer.1} parent=39 // pred_region
          %p274 = scmp.lt.s32.totalorder %s16, 1
          %s275 = scalar_select %p274, %s16, 1
          %s276 = smul.addr %s275, 2
          %s277 = smul.addr %s276, 4
          %s278 = scalar_lea.vmem %s0, %s277
        $region44: #{spatial_attn_layer.1} parent=39 // pred_fallthru
          _
      $region40: #{spatial_attn_layer.1} parent=5 // pred_fallthru
        _
      %p279 = scmp.le.s32.totalorder 1, %s16
      %p280 = scmp.lt.s32.totalorder %s16, 3
      %p281 = pnand %p279, %p280
      %p282 = pneg %p281
      // Predicated region
      $region45: #{spatial_attn_layer.1} parent=5 // pred_check
        _
      $region46: #{spatial_attn_layer.1} parent=5 // pred_check_branch
        %284 = sbr.rel (%p281) target = $region48
      $region47: #{spatial_attn_layer.1} parent=5 // pred_region
        %s285 = ssub.s32 %s16, 1
        // Predicated region
        $region49: #{spatial_attn_layer.1} parent=47 // pred_check
          %p286 = pneg %p84
        $region50: #{spatial_attn_layer.1} parent=47 // pred_check_branch
          %288 = sbr.rel (%p286) target = $region52
        $region51: #{spatial_attn_layer.1} parent=47 // pred_region
          %289 = dma.done [#allocation5], 16
        $region52: #{spatial_attn_layer.1} parent=47 // pred_fallthru
          _
        // Predicated region
        $region53: #{spatial_attn_layer.1} parent=47 // pred_check
          %p290 = pneg %p105
        $region54: #{spatial_attn_layer.1} parent=47 // pred_check_branch
          %292 = sbr.rel (%p290) target = $region56
        $region55: #{spatial_attn_layer.1} parent=47 // pred_region
          %293 = dma.done [#allocation7], 16
        $region56: #{spatial_attn_layer.1} parent=47 // pred_fallthru
          _
        // Predicated region
        $region57: #{spatial_attn_layer.1} parent=47 // pred_check
          %p294 = pneg %p126
        $region58: #{spatial_attn_layer.1} parent=47 // pred_check_branch
          %296 = sbr.rel (%p294) target = $region60
        $region59: #{spatial_attn_layer.1} parent=47 // pred_region
          %297 = dma.done [#allocation7], 16
        $region60: #{spatial_attn_layer.1} parent=47 // pred_fallthru
          _
        // Predicated region
        $region61: #{spatial_attn_layer.1} parent=47 // pred_check
          %p298 = pneg %p147
        $region62: #{spatial_attn_layer.1} parent=47 // pred_check_branch
          %300 = sbr.rel (%p298) target = $region64
        $region63: #{spatial_attn_layer.1} parent=47 // pred_region
          %301 = dma.done [#allocation10], 64
        $region64: #{spatial_attn_layer.1} parent=47 // pred_fallthru
          _
        // Predicated region
        $region65: #{spatial_attn_layer.1} parent=47 // pred_check
          %p302 = pneg %p168
        $region66: #{spatial_attn_layer.1} parent=47 // pred_check_branch
          %304 = sbr.rel (%p302) target = $region68
        $region67: #{spatial_attn_layer.1} parent=47 // pred_region
          %305 = dma.done [#allocation10], 16
        $region68: #{spatial_attn_layer.1} parent=47 // pred_fallthru
          _
        %306 = sfence
        %p307 = scmp.lt.s32.totalorder %s21, 1
        %s308 = scalar_select %p307, %s21, 1
        %s309 = smul.addr %s308, 2
        %s310 = smul.addr %s309, 4
        %s311 = scalar_lea.vmem %s0, %s310
        %p312 = pneg %p42
        %p313 = pneg %p39
        %p314 = pneg %p63
        %p315 = pneg %p60
        %p316 = pneg %p84
        %p317 = pneg %p81
        %p318 = pneg %p105
        %p319 = pneg %p102
        %p320 = pneg %p126
        %p321 = pneg %p123
        %p322 = pneg %p147
        %p323 = pneg %p144
        %p324 = pneg %p168
        %p325 = pneg %p165
        %p326 = pneg %p194
        %p327 = pneg %p191
        %p328 = scmp.lt.s32.totalorder %s21, 1
        %s329 = scalar_select %p328, %s21, 1
        %s330 = smul.addr %s329, 2
        %s331 = smul.addr %s330, 4
        %s332 = scalar_lea.vmem %s7, %s331
        %p333 = scmp.lt.s32.totalorder %s21, 1
        %s334 = scalar_select %p333, %s21, 1
        %s335 = smul.addr %s334, 2
        %s336 = smul.addr %s335, 4
        %s337 = scalar_lea.vmem %s0, %s336
        %p338 = scmp.lt.s32.totalorder %s21, 1
        %s339 = scalar_select %p338, %s21, 1
        %s340 = smul.addr %s339, 2
        %s341 = smul.addr %s340, 4
        %s342 = scalar_lea.vmem %s7, %s341
        %343 = vst [vmem:[#allocation2] sm:$0x3] 0.0
        %344 = vst [vmem:[#allocation2 + $0x6] sm:$0x3] 0.0
        %v345 = vld [vmem:[%s337] sm:$0xff]
        %v347 = vcombine.high %v345, %v345
        %vm349 = vcmask 1043456
        %v350 = vsel %vm349, %v345, -inf
        %v351 = vrot.slane %v350, 4
        %v352 = vmax.f32 %v350, %v351
        %v353 = vrot.slane %v352, 2
        %v354 = vmax.f32 %v352, %v353
        %v355 = vrot.slane %v354, 1
        %v356 = vmax.f32 %v354, %v355
        %v357 = vsel %vm349, %v347, -inf
        %v358 = vrot.slane %v357, 4
        %v359 = vmax.f32 %v357, %v358
        %v360 = vrot.slane %v359, 2
        %v361 = vmax.f32 %v359, %v360
        %v362 = vrot.slane %v361, 1
        %v363 = vmax.f32 %v361, %v362
        %v364 = vsel %vm349, %v345, 0.0
        %v365 = vrot.slane %v364, 4
        %v366 = vadd.f32 %v364, %v365
        %v367 = vrot.slane %v366, 2
        %v368 = vadd.f32 %v366, %v367
        %v369 = vrot.slane %v368, 1
        %v370 = vadd.f32 %v368, %v369
        %v371 = vsel %vm349, %v347, 0.0
        %v372 = vrot.slane %v371, 4
        %v373 = vadd.f32 %v371, %v372
        %v374 = vrot.slane %v373, 2
        %v375 = vadd.f32 %v373, %v374
        %v376 = vrot.slane %v375, 1
        %v377 = vadd.f32 %v375, %v376
        %v378 = vmul.f32 %v370, 0.25
        %v379 = vmul.f32 %v377, 0.25
        %v382 = vcombine.low %v356, %v363
        %v384 = vunpack.c.l.s4 1966171168
        %v385 = vunpack.c.0.s8 %v384
        %v386 = vlaneseq
        %v387 = vshrl.u32 %v386, 7
        %v388 = vsub.s32 %v385, %v387
        %v389 = vrot.slane %v382, %v388
        %v391 = vunpack.c.l.s4 1966171168
        %v392 = vunpack.c.0.s8 %v391
        %v393 = vlaneseq
        %v394 = vshrl.u32 %v393, 7
        %v395 = vsub.s32 %v392, %v394
        %v396 = vrot.slane %v389, %v395
        %v398 = vlaneseq
        %vm399 = vcmp.ge.s32.totalorder %v398, 0
        %vm400 = vcmp.lt.s32.totalorder %v398, 256
        %vm401 = vmand %vm399, %vm400
        %s402 = scalar_lea.vmem [#allocation2], 2
        %403 = vst.msk [vmem:[%s402] ss:$2 sm:$0x3] %vm401, %v396
        %v406 = vcombine.low %v378, %v379
        %v408 = vunpack.c.l.s4 1966171168
        %v409 = vunpack.c.0.s8 %v408
        %v410 = vlaneseq
        %v411 = vshrl.u32 %v410, 7
        %v412 = vsub.s32 %v409, %v411
        %v413 = vrot.slane %v406, %v412
        %v415 = vunpack.c.l.s4 1966171168
        %v416 = vunpack.c.0.s8 %v415
        %v417 = vlaneseq
        %v418 = vshrl.u32 %v417, 7
        %v419 = vsub.s32 %v416, %v418
        %v420 = vrot.slane %v413, %v419
        %s422 = scalar_lea.vmem [#allocation2], 3
        %423 = vst.msk [vmem:[%s422] ss:$2 sm:$0x3] %vm401, %v420
        %v424 = vadd.f32 %v356, %v363
        %425 = vadd.xlane.f32.xlu0 %v424
        %v426 = vpop.xlane.xlu0 %425
        %v427 = vadd.f32 %v426, 0.0
        %v428 = vadd.f32 %v378, %v379
        %429 = vadd.xlane.f32.xlu0 %v428
        %v430 = vpop.xlane.xlu0 %429
        %v431 = vadd.f32 %v430, 0.0
        %v432 = vmul.f32 %v427, 0.00390625
        %v433 = vmul.f32 %v431, 0.00390625
        %s434 = sld [smem:[#allocation4]]
        %v435 = vstv %s434
        %v436 = vmul.f32 %v435, %v432
        %s437 = sld [smem:[#allocation4 + $0x1]]
        %v438 = vstv %s437
        %v439 = vmul.f32 %v438, %v433
        %v440 = vadd.f32 %v436, %v439
        %v441 = vmax.f32 %v440, 0.0
        %s442 = sld [smem:[#allocation6]]
        %v443 = vstv %s442
        %v444 = vmul.f32 %v441, %v443
        %s445 = sld [smem:[#allocation8]]
        %v446 = vstv %s445
        %v447 = vadd.f32 %v444, %v446
        %v448 = vmul.f32 %v447, 0.029411765
        %s449 = sld [smem:[#allocation6 + $0x1]]
        %v450 = vstv %s449
        %v451 = vmul.f32 %v441, %v450
        %s452 = sld [smem:[#allocation8 + $0x1]]
        %v453 = vstv %s452
        %v454 = vadd.f32 %v451, %v453
        %v455 = vmul.f32 %v454, 0.029411765
        %s456 = sld [smem:[#allocation6 + $0x2]]
        %v457 = vstv %s456
        %v458 = vmul.f32 %v441, %v457
        %s459 = sld [smem:[#allocation8 + $0x2]]
        %v460 = vstv %s459
        %v461 = vadd.f32 %v458, %v460
        %v462 = vmul.f32 %v461, 0.029411765
        %s463 = sld [smem:[#allocation6 + $0x3]]
        %v464 = vstv %s463
        %v465 = vmul.f32 %v441, %v464
        %s466 = sld [smem:[#allocation8 + $0x3]]
        %v467 = vstv %s466
        %v468 = vadd.f32 %v465, %v467
        %v469 = vmul.f32 %v468, 0.029411765
        %v470 = vmax.f32 %v448, %v455
        %v471 = vmax.f32 %v470, %v462
        %v472 = vmax.f32 %v471, %v469
        %v473 = vsub.f32 %v448, %v472
        %v474 = vmul.f32 %v473, 1.442695
        %v475 = vpow.pop %v474
        %v476 = vsub.f32 %v455, %v472
        %v477 = vmul.f32 %v476, 1.442695
        %v478 = vpow.pop %v477
        %v479 = vsub.f32 %v462, %v472
        %v480 = vmul.f32 %v479, 1.442695
        %v481 = vpow.pop %v480
        %v482 = vsub.f32 %v469, %v472
        %v483 = vmul.f32 %v482, 1.442695
        %v484 = vpow.pop %v483
        %v485 = vadd.f32 %v475, %v478
        %v486 = vadd.f32 %v485, %v481
        %v487 = vadd.f32 %v486, %v484
        %v488 = vrcp.pop %v487
        %v489 = vmul.f32 %v475, %v488
        %v490 = vmul.f32 %v478, %v488
        %v491 = vmul.f32 %v481, %v488
        %v492 = vmul.f32 %v484, %v488
        %s493 = sld [smem:[#allocation11]]
        %v494 = vstv %s493
        %v495 = vmul.f32 %v489, %v494
        %s496 = sld [smem:[#allocation11 + $0x1]]
        %v497 = vstv %s496
        %v498 = vmul.f32 %v490, %v497
        %v499 = vadd.f32 %v495, %v498
        %s500 = sld [smem:[#allocation11 + $0x2]]
        %v501 = vstv %s500
        %v502 = vmul.f32 %v491, %v501
        %v503 = vadd.f32 %v499, %v502
        %s504 = sld [smem:[#allocation11 + $0x3]]
        %v505 = vstv %s504
        %v506 = vmul.f32 %v492, %v505
        %v507 = vadd.f32 %v503, %v506
        %s508 = sld [smem:[#allocation9]]
        %v509 = vstv %s508
        %v510 = vmul.f32 %v489, %v509
        %s511 = sld [smem:[#allocation9 + $0x80]]
        %v512 = vstv %s511
        %v513 = vmul.f32 %v490, %v512
        %v514 = vadd.f32 %v510, %v513
        %s515 = sld [smem:[#allocation9 + $0x100]]
        %v516 = vstv %s515
        %v517 = vmul.f32 %v491, %v516
        %v518 = vadd.f32 %v514, %v517
        %s519 = sld [smem:[#allocation9 + $0x180]]
        %v520 = vstv %s519
        %v521 = vmul.f32 %v492, %v520
        %v522 = vadd.f32 %v518, %v521
        %s523 = sld [smem:[#allocation9 + $0x1]]
        %v524 = vstv %s523
        %v525 = vmul.f32 %v489, %v524
        %s526 = sld [smem:[#allocation9 + $0x81]]
        %v527 = vstv %s526
        %v528 = vmul.f32 %v490, %v527
        %v529 = vadd.f32 %v525, %v528
        %s530 = sld [smem:[#allocation9 + $0x101]]
        %v531 = vstv %s530
        %v532 = vmul.f32 %v491, %v531
        %v533 = vadd.f32 %v529, %v532
        %s534 = sld [smem:[#allocation9 + $0x181]]
        %v535 = vstv %s534
        %v536 = vmul.f32 %v492, %v535
        %v537 = vadd.f32 %v533, %v536
        %s538 = sld [smem:[#allocation9 + $0x2]]
        %v539 = vstv %s538
        %v540 = vmul.f32 %v489, %v539
        %s541 = sld [smem:[#allocation9 + $0x82]]
        %v542 = vstv %s541
        %v543 = vmul.f32 %v490, %v542
        %v544 = vadd.f32 %v540, %v543
        %s545 = sld [smem:[#allocation9 + $0x102]]
        %v546 = vstv %s545
        %v547 = vmul.f32 %v491, %v546
        %v548 = vadd.f32 %v544, %v547
        %s549 = sld [smem:[#allocation9 + $0x182]]
        %v550 = vstv %s549
        %v551 = vmul.f32 %v492, %v550
        %v552 = vadd.f32 %v548, %v551
        %s553 = sld [smem:[#allocation9 + $0x3]]
        %v554 = vstv %s553
        %v555 = vmul.f32 %v489, %v554
        %s556 = sld [smem:[#allocation9 + $0x83]]
        %v557 = vstv %s556
        %v558 = vmul.f32 %v490, %v557
        %v559 = vadd.f32 %v555, %v558
        %s560 = sld [smem:[#allocation9 + $0x103]]
        %v561 = vstv %s560
        %v562 = vmul.f32 %v491, %v561
        %v563 = vadd.f32 %v559, %v562
        %s564 = sld [smem:[#allocation9 + $0x183]]
        %v565 = vstv %s564
        %v566 = vmul.f32 %v492, %v565
        %v567 = vadd.f32 %v563, %v566
        %s568 = sld [smem:[#allocation9 + $0x4]]
        %v569 = vstv %s568
        %v570 = vmul.f32 %v489, %v569
        %s571 = sld [smem:[#allocation9 + $0x84]]
        %v572 = vstv %s571
        %v573 = vmul.f32 %v490, %v572
        %v574 = vadd.f32 %v570, %v573
        %s575 = sld [smem:[#allocation9 + $0x104]]
        %v576 = vstv %s575
        %v577 = vmul.f32 %v491, %v576
        %v578 = vadd.f32 %v574, %v577
        %s579 = sld [smem:[#allocation9 + $0x184]]
        %v580 = vstv %s579
        %v581 = vmul.f32 %v492, %v580
        %v582 = vadd.f32 %v578, %v581
        %s583 = sld [smem:[#allocation9 + $0x5]]
        %v584 = vstv %s583
        %v585 = vmul.f32 %v489, %v584
        %s586 = sld [smem:[#allocation9 + $0x85]]
        %v587 = vstv %s586
        %v588 = vmul.f32 %v490, %v587
        %v589 = vadd.f32 %v585, %v588
        %s590 = sld [smem:[#allocation9 + $0x105]]
        %v591 = vstv %s590
        %v592 = vmul.f32 %v491, %v591
        %v593 = vadd.f32 %v589, %v592
        %s594 = sld [smem:[#allocation9 + $0x185]]
        %v595 = vstv %s594
        %v596 = vmul.f32 %v492, %v595
        %v597 = vadd.f32 %v593, %v596
        %s598 = sld [smem:[#allocation9 + $0x6]]
        %v599 = vstv %s598
        %v600 = vmul.f32 %v489, %v599
        %s601 = sld [smem:[#allocation9 + $0x86]]
        %v602 = vstv %s601
        %v603 = vmul.f32 %v490, %v602
        %v604 = vadd.f32 %v600, %v603
        %s605 = sld [smem:[#allocation9 + $0x106]]
        %v606 = vstv %s605
        %v607 = vmul.f32 %v491, %v606
        %v608 = vadd.f32 %v604, %v607
        %s609 = sld [smem:[#allocation9 + $0x186]]
        %v610 = vstv %s609
        %v611 = vmul.f32 %v492, %v610
        %v612 = vadd.f32 %v608, %v611
        %s613 = sld [smem:[#allocation9 + $0x7]]
        %v614 = vstv %s613
        %v615 = vmul.f32 %v489, %v614
        %s616 = sld [smem:[#allocation9 + $0x87]]
        %v617 = vstv %s616
        %v618 = vmul.f32 %v490, %v617
        %v619 = vadd.f32 %v615, %v618
        %s620 = sld [smem:[#allocation9 + $0x107]]
        %v621 = vstv %s620
        %v622 = vmul.f32 %v491, %v621
        %v623 = vadd.f32 %v619, %v622
        %s624 = sld [smem:[#allocation9 + $0x187]]
        %v625 = vstv %s624
        %v626 = vmul.f32 %v492, %v625
        %v627 = vadd.f32 %v623, %v626
        %s628 = sld [smem:[#allocation9 + $0x8]]
        %v629 = vstv %s628
        %v630 = vmul.f32 %v489, %v629
        %s631 = sld [smem:[#allocation9 + $0x88]]
        %v632 = vstv %s631
        %v633 = vmul.f32 %v490, %v632
        %v634 = vadd.f32 %v630, %v633
        %s635 = sld [smem:[#allocation9 + $0x108]]
        %v636 = vstv %s635
        %v637 = vmul.f32 %v491, %v636
        %v638 = vadd.f32 %v634, %v637
        %s639 = sld [smem:[#allocation9 + $0x188]]
        %v640 = vstv %s639
        %v641 = vmul.f32 %v492, %v640
        %v642 = vadd.f32 %v638, %v641
        %s643 = sld [smem:[#allocation9 + $0x9]]
        %v644 = vstv %s643
        %v645 = vmul.f32 %v489, %v644
        %s646 = sld [smem:[#allocation9 + $0x89]]
        %v647 = vstv %s646
        %v648 = vmul.f32 %v490, %v647
        %v649 = vadd.f32 %v645, %v648
        %s650 = sld [smem:[#allocation9 + $0x109]]
        %v651 = vstv %s650
        %v652 = vmul.f32 %v491, %v651
        %v653 = vadd.f32 %v649, %v652
        %s654 = sld [smem:[#allocation9 + $0x189]]
        %v655 = vstv %s654
        %v656 = vmul.f32 %v492, %v655
        %v657 = vadd.f32 %v653, %v656
        %s658 = sld [smem:[#allocation9 + $0xa]]
        %v659 = vstv %s658
        %v660 = vmul.f32 %v489, %v659
        %s661 = sld [smem:[#allocation9 + $0x8a]]
        %v662 = vstv %s661
        %v663 = vmul.f32 %v490, %v662
        %v664 = vadd.f32 %v660, %v663
        %s665 = sld [smem:[#allocation9 + $0x10a]]
        %v666 = vstv %s665
        %v667 = vmul.f32 %v491, %v666
        %v668 = vadd.f32 %v664, %v667
        %s669 = sld [smem:[#allocation9 + $0x18a]]
        %v670 = vstv %s669
        %v671 = vmul.f32 %v492, %v670
        %v672 = vadd.f32 %v668, %v671
        %s673 = sld [smem:[#allocation9 + $0xb]]
        %v674 = vstv %s673
        %v675 = vmul.f32 %v489, %v674
        %s676 = sld [smem:[#allocation9 + $0x8b]]
        %v677 = vstv %s676
        %v678 = vmul.f32 %v490, %v677
        %v679 = vadd.f32 %v675, %v678
        %s680 = sld [smem:[#allocation9 + $0x10b]]
        %v681 = vstv %s680
        %v682 = vmul.f32 %v491, %v681
        %v683 = vadd.f32 %v679, %v682
        %s684 = sld [smem:[#allocation9 + $0x18b]]
        %v685 = vstv %s684
        %v686 = vmul.f32 %v492, %v685
        %v687 = vadd.f32 %v683, %v686
        %s688 = sld [smem:[#allocation9 + $0xc]]
        %v689 = vstv %s688
        %v690 = vmul.f32 %v489, %v689
        %s691 = sld [smem:[#allocation9 + $0x8c]]
        %v692 = vstv %s691
        %v693 = vmul.f32 %v490, %v692
        %v694 = vadd.f32 %v690, %v693
        %s695 = sld [smem:[#allocation9 + $0x10c]]
        %v696 = vstv %s695
        %v697 = vmul.f32 %v491, %v696
        %v698 = vadd.f32 %v694, %v697
        %s699 = sld [smem:[#allocation9 + $0x18c]]
        %v700 = vstv %s699
        %v701 = vmul.f32 %v492, %v700
        %v702 = vadd.f32 %v698, %v701
        %s703 = sld [smem:[#allocation9 + $0xd]]
        %v704 = vstv %s703
        %v705 = vmul.f32 %v489, %v704
        %s706 = sld [smem:[#allocation9 + $0x8d]]
        %v707 = vstv %s706
        %v708 = vmul.f32 %v490, %v707
        %v709 = vadd.f32 %v705, %v708
        %s710 = sld [smem:[#allocation9 + $0x10d]]
        %v711 = vstv %s710
        %v712 = vmul.f32 %v491, %v711
        %v713 = vadd.f32 %v709, %v712
        %s714 = sld [smem:[#allocation9 + $0x18d]]
        %v715 = vstv %s714
        %v716 = vmul.f32 %v492, %v715
        %v717 = vadd.f32 %v713, %v716
        %s718 = sld [smem:[#allocation9 + $0xe]]
        %v719 = vstv %s718
        %v720 = vmul.f32 %v489, %v719
        %s721 = sld [smem:[#allocation9 + $0x8e]]
        %v722 = vstv %s721
        %v723 = vmul.f32 %v490, %v722
        %v724 = vadd.f32 %v720, %v723
        %s725 = sld [smem:[#allocation9 + $0x10e]]
        %v726 = vstv %s725
        %v727 = vmul.f32 %v491, %v726
        %v728 = vadd.f32 %v724, %v727
        %s729 = sld [smem:[#allocation9 + $0x18e]]
        %v730 = vstv %s729
        %v731 = vmul.f32 %v492, %v730
        %v732 = vadd.f32 %v728, %v731
        %s733 = sld [smem:[#allocation9 + $0xf]]
        %v734 = vstv %s733
        %v735 = vmul.f32 %v489, %v734
        %s736 = sld [smem:[#allocation9 + $0x8f]]
        %v737 = vstv %s736
        %v738 = vmul.f32 %v490, %v737
        %v739 = vadd.f32 %v735, %v738
        %s740 = sld [smem:[#allocation9 + $0x10f]]
        %v741 = vstv %s740
        %v742 = vmul.f32 %v491, %v741
        %v743 = vadd.f32 %v739, %v742
        %s744 = sld [smem:[#allocation9 + $0x18f]]
        %v745 = vstv %s744
        %v746 = vmul.f32 %v492, %v745
        %v747 = vadd.f32 %v743, %v746
        %s748 = sld [smem:[#allocation9 + $0x10]]
        %v749 = vstv %s748
        %v750 = vmul.f32 %v489, %v749
        %s751 = sld [smem:[#allocation9 + $0x90]]
        %v752 = vstv %s751
        %v753 = vmul.f32 %v490, %v752
        %v754 = vadd.f32 %v750, %v753
        %s755 = sld [smem:[#allocation9 + $0x110]]
        %v756 = vstv %s755
        %v757 = vmul.f32 %v491, %v756
        %v758 = vadd.f32 %v754, %v757
        %s759 = sld [smem:[#allocation9 + $0x190]]
        %v760 = vstv %s759
        %v761 = vmul.f32 %v492, %v760
        %v762 = vadd.f32 %v758, %v761
        %s763 = sld [smem:[#allocation9 + $0x11]]
        %v764 = vstv %s763
        %v765 = vmul.f32 %v489, %v764
        %s766 = sld [smem:[#allocation9 + $0x91]]
        %v767 = vstv %s766
        %v768 = vmul.f32 %v490, %v767
        %v769 = vadd.f32 %v765, %v768
        %s770 = sld [smem:[#allocation9 + $0x111]]
        %v771 = vstv %s770
        %v772 = vmul.f32 %v491, %v771
        %v773 = vadd.f32 %v769, %v772
        %s774 = sld [smem:[#allocation9 + $0x191]]
        %v775 = vstv %s774
        %v776 = vmul.f32 %v492, %v775
        %v777 = vadd.f32 %v773, %v776
        %v778 = vld [vmem:[%s1] ss:$2 sm:$0x3]
        %s779 = scalar_lea.vmem %s1, 1
        %v780 = vld [vmem:[%s779] ss:$2 sm:$0x3]
        %v781 = vld [vmem:[#allocation2] ss:$2 sm:$0x7]
        %783 = vrot.lane.b32.xlu0 %v778, 111
        %v784 = vpop.permute.xlu0 %783
        %v785 = vrot.slane %v784, 7
        %vm786 = vcmask 908288
        %v787 = vsel %vm786, %v785, %v784
        %v789 = vmul.f32 %v781, %v787
        %v790 = vmul.f32 %v522, %v789
        %v791 = vadd.f32 %v507, %v790
        %v792 = vmul.f32 %v537, %v781
        %794 = vrot.lane.b32.xlu0 %v792, 127
        %v795 = vpop.permute.xlu0 %794
        %v796 = vrot.slane %v795, 1
        %vm797 = vcmask 1039360
        %v798 = vsel %vm797, %v795, %v796
        %v800 = vadd.f32 %v791, %v798
        %802 = vrot.lane.b32.xlu0 %v780, 113
        %v803 = vpop.permute.xlu0 %802
        %v804 = vrot.slane %v803, 7
        %vm805 = vcmask 924672
        %v806 = vsel %vm805, %v804, %v803
        %v808 = vmul.f32 %v781, %v806
        %v809 = vmul.f32 %v552, %v808
        %811 = vrot.lane.b32.xlu0 %v809, 126
        %v812 = vpop.permute.xlu0 %811
        %v813 = vrot.slane %v812, 1
        %vm814 = vcmask 1031168
        %v815 = vsel %vm814, %v812, %v813
        %v817 = vadd.f32 %v800, %v815
        %818 = vrot.lane.b32.xlu0 %v778, 127
        %v819 = vpop.permute.xlu0 %818
        %v820 = vrot.slane %v819, 7
        %v821 = vsel %vm797, %v820, %v819
        %v823 = vmul.f32 %v781, %v821
        %v824 = vmul.f32 %v567, %v823
        %826 = vrot.lane.b32.xlu0 %v824, 112
        %v827 = vpop.permute.xlu0 %826
        %v828 = vrot.slane %v827, 1
        %vm829 = vcmask 916480
        %v830 = vsel %vm829, %v827, %v828
        %v832 = vadd.f32 %v817, %v830
        %v833 = vld [vmem:[%s402] ss:$2 sm:$0x3]
        %v834 = vmul.f32 %v582, %v833
        %836 = vrot.lane.b32.xlu0 %v834, 111
        %v837 = vpop.permute.xlu0 %836
        %v838 = vrot.slane %v837, 7
        %v839 = vsel %vm786, %v838, %v837
        %v841 = vadd.f32 %v832, %v839
        %s842 = scalar_lea.vmem [#allocation2], 2
        %v843 = vld [vmem:[%s842] ss:$2 sm:$0x7]
        %844 = vrot.lane.b32.xlu0 %v780, 1
        %v845 = vpop.permute.xlu0 %844
        %v846 = vrot.slane %v845, 7
        %vm847 = vcmask 7168
        %v848 = vsel %vm847, %v846, %v845
        %v850 = vmul.f32 %v843, %v848
        %v851 = vmul.f32 %v597, %v850
        %853 = vrot.lane.b32.xlu0 %v851, 110
        %v854 = vpop.permute.xlu0 %853
        %v855 = vrot.slane %v854, 7
        %vm856 = vcmask 900096
        %v857 = vsel %vm856, %v855, %v854
        %v859 = vadd.f32 %v841, %v857
        %860 = vrot.lane.b32.xlu0 %v778, 15
        %v861 = vpop.permute.xlu0 %860
        %v862 = vrot.slane %v861, 7
        %vm863 = vcmask 121856
        %v864 = vsel %vm863, %v862, %v861
        %v866 = vmul.f32 %v843, %v864
        %v867 = vmul.f32 %v612, %v866
        %869 = vrot.lane.b32.xlu0 %v867, 96
        %v870 = vpop.permute.xlu0 %869
        %v871 = vrot.slane %v870, 7
        %vm872 = vcmask 785408
        %v873 = vsel %vm872, %v871, %v870
        %v875 = vadd.f32 %v859, %v873
        %v876 = vmul.f32 %v627, %v843
        %878 = vrot.lane.b32.xlu0 %v876, 95
        %v879 = vpop.permute.xlu0 %878
        %v880 = vrot.slane %v879, 7
        %vm881 = vcmask 777216
        %v882 = vsel %vm881, %v880, %v879
        %v884 = vadd.f32 %v875, %v882
        %885 = vrot.lane.b32.xlu0 %v780, 17
        %v886 = vpop.permute.xlu0 %885
        %v887 = vrot.slane %v886, 7
        %vm888 = vcmask 138240
        %v889 = vsel %vm888, %v887, %v886
        %v891 = vmul.f32 %v843, %v889
        %v892 = vmul.f32 %v642, %v891
        %894 = vrot.lane.b32.xlu0 %v892, 94
        %v895 = vpop.permute.xlu0 %894
        %v896 = vrot.slane %v895, 7
        %vm897 = vcmask 769024
        %v898 = vsel %vm897, %v896, %v895
        %v900 = vadd.f32 %v884, %v898
        %s901 = scalar_lea.vmem [#allocation2], 1
        %v902 = vld [vmem:[%s901] ss:$2 sm:$0x7]
        %v903 = vmul.f32 %v902, %v787
        %v904 = vmul.f32 %v657, %v903
        %v905 = vadd.f32 %v900, %v904
        %v906 = vmul.f32 %v672, %v902
        %908 = vrot.lane.b32.xlu0 %v906, 127
        %v909 = vpop.permute.xlu0 %908
        %v910 = vrot.slane %v909, 1
        %v911 = vsel %vm797, %v909, %v910
        %v913 = vadd.f32 %v905, %v911
        %v914 = vmul.f32 %v902, %v806
        %v915 = vmul.f32 %v687, %v914
        %917 = vrot.lane.b32.xlu0 %v915, 126
        %v918 = vpop.permute.xlu0 %917
        %v919 = vrot.slane %v918, 1
        %v920 = vsel %vm814, %v918, %v919
        %v922 = vadd.f32 %v913, %v920
        %v923 = vmul.f32 %v902, %v821
        %v924 = vmul.f32 %v702, %v923
        %926 = vrot.lane.b32.xlu0 %v924, 112
        %v927 = vpop.permute.xlu0 %926
        %v928 = vrot.slane %v927, 1
        %v929 = vsel %vm829, %v927, %v928
        %v931 = vadd.f32 %v922, %v929
        %v932 = vld [vmem:[%s422] ss:$2 sm:$0x3]
        %v933 = vmul.f32 %v717, %v932
        %935 = vrot.lane.b32.xlu0 %v933, 111
        %v936 = vpop.permute.xlu0 %935
        %v937 = vrot.slane %v936, 7
        %v938 = vsel %vm786, %v937, %v936
        %v940 = vadd.f32 %v931, %v938
        %s941 = scalar_lea.vmem [#allocation2], 3
        %v942 = vld [vmem:[%s941] ss:$2 sm:$0x7]
        %v943 = vmul.f32 %v942, %v848
        %v944 = vmul.f32 %v732, %v943
        %946 = vrot.lane.b32.xlu0 %v944, 110
        %v947 = vpop.permute.xlu0 %946
        %v948 = vrot.slane %v947, 7
        %v949 = vsel %vm856, %v948, %v947
        %v951 = vadd.f32 %v940, %v949
        %v952 = vmul.f32 %v942, %v864
        %v953 = vmul.f32 %v747, %v952
        %955 = vrot.lane.b32.xlu0 %v953, 96
        %v956 = vpop.permute.xlu0 %955
        %v957 = vrot.slane %v956, 7
        %v958 = vsel %vm872, %v957, %v956
        %v960 = vadd.f32 %v951, %v958
        %v961 = vmul.f32 %v762, %v942
        %963 = vrot.lane.b32.xlu0 %v961, 95
        %v964 = vpop.permute.xlu0 %963
        %v965 = vrot.slane %v964, 7
        %v966 = vsel %vm881, %v965, %v964
        %v968 = vadd.f32 %v960, %v966
        %v969 = vmul.f32 %v942, %v889
        %v970 = vmul.f32 %v777, %v969
        %972 = vrot.lane.b32.xlu0 %v970, 94
        %v973 = vpop.permute.xlu0 %972
        %v974 = vrot.slane %v973, 7
        %v975 = vsel %vm897, %v974, %v973
        %v977 = vadd.f32 %v968, %v975
        %v978 = vsub.f32 0.0, %v977
        %v979 = vmul.f32 %v978, 1.442695
        %v980 = vpow.pop %v979
        %v981 = vadd.f32 %v980, 1.0
        %v982 = vrcp.pop %v981
        %984 = vrot.lane.b32.xlu0 %v982, 17
        %v985 = vpop.permute.xlu0 %984
        %v986 = vrot.slane %v985, 1
        %v987 = vsel %vm888, %v985, %v986
        %989 = vst.msk [vmem:[#allocation3] sm:$0x3] %vm401, %v987
        %v990 = vld [vmem:[#allocation3] sm:$0x3]
        %v992 = vlaneseq
        %v993 = vshrl.u32 %v992, 7
        %v994 = vsub.s32 0, %v993
        %v995 = vrot.slane %v990, %v994
        %v996 = vlaneseq
        %v997 = vshrl.u32 %v996, 7
        %v998 = vsub.s32 1, %v997
        %v999 = vrot.slane %v990, %v998
        %v1000 = vld [vmem:[%s337] sm:$0xff]
        %v1001 = vcombine.low %v995, %v999
        %v1003 = vmul.f32 %v1000, %v1001
        %1004 = vst [vmem:[%s342] sm:$0xff] %v1003
        %p1005 = scmp.lt.s32.totalorder %s21, 1
        %s1006 = scalar_select %p1005, %s21, 1
        %s1007 = smul.addr %s1006, 2
        %s1008 = smul.addr %s1007, 4
        %s1009 = scalar_lea.vmem %s7, %s1008
        // Predicated region
        $region69: #{spatial_attn_layer.1} parent=47 // pred_check
          %p1010 = pneg %p191
        $region70: #{spatial_attn_layer.1} parent=47 // pred_check_branch
          %1012 = sbr.rel (%p1010) target = $region72
        $region71: #{spatial_attn_layer.1} parent=47 // pred_region
          _
        $region72: #{spatial_attn_layer.1} parent=47 // pred_fallthru
          _
      $region48: #{spatial_attn_layer.1} parent=5 // pred_fallthru
        _
      %p1013 = scmp.le.s32.totalorder 2, %s16
      // Predicated region
      $region73: #{spatial_attn_layer.1} parent=5 // pred_check
        %p1014 = pneg %p1013
      $region74: #{spatial_attn_layer.1} parent=5 // pred_check_branch
        %1016 = sbr.rel (%p1014) target = $region76
      $region75: #{spatial_attn_layer.1} parent=5 // pred_region
        %s1017 = ssub.s32 %s16, 2
        // Predicated region
        $region77: #{spatial_attn_layer.1} parent=75 // pred_check
          %p1018 = pneg %p197
        $region78: #{spatial_attn_layer.1} parent=75 // pred_check_branch
          %1020 = sbr.rel (%p1018) target = $region80
        $region79: #{spatial_attn_layer.1} parent=75 // pred_region
          %p1021 = scmp.lt.s32.totalorder %s22, 1
          %s1022 = scalar_select %p1021, %s22, 1
          %s1023 = smul.addr %s1022, 2
          %s1024 = smul.addr %s1023, 4
          %s1025 = scalar_lea.vmem %s7, %s1024
        $region80: #{spatial_attn_layer.1} parent=75 // pred_fallthru
          _
      $region76: #{spatial_attn_layer.1} parent=5 // pred_fallthru
        _
    $region6: #{spatial_attn_layer.1} parent=1 // loop_footer
      %s20 = sadd.s32 1, %s16
    $region7: #{spatial_attn_layer.1} parent=1 // loop_footer_branch
      %15 = sbr.rel target = $region3
    $region8: #{spatial_attn_layer.1} parent=1 // loop_exit
      _
    %1026 = vsyncpa [#allocation5], 1
    %s1027 = scalar_lea.sflag [#allocation5], 1
    %1028 = vsyncpa %s1027, 1
    %1029 = vsyncpa [#allocation7], 1
    %1030 = vsyncpa [#allocation10], 1

</llo_original>
